<compile_context>
chip_gen: v7x
topology: tpu7x:2x2x1
jax: 0.10.0
libtpu: 0.0.40
codegen_flags: <defaults>
</compile_context>

<pallas_src>
import functools

import jax
import jax.numpy as jnp
from jax import lax
from jax.experimental import pallas as pl
from jax.experimental.pallas import tpu as pltpu


def _round_up(x, m):
    return (x + m - 1) // m * m


def rnn_seq_kernel(x_ref, h0_ref, wx_ref, wh_ref, b_ref,
                   out_ref, hfin_ref, h_scr, *, t_chunk, t_last, o_pad):
    """Fused RNN over a chunk of t_chunk timesteps.

    x_ref   : (Tc, Bt, I)     bf16 input chunk
    h0_ref  : (Bt, H)         f32 initial hidden (resident)
    wx_ref  : (I, o_pad + H)  bf16 rows of fused [W_o|W_h] hit by the input
    wh_ref  : (H, o_pad + H)  bf16 rows of fused [W_o|W_h] hit by the hidden
    b_ref   : (1, o_pad + H)  f32 fused bias; cols [n_out, o_pad) hold -1e30
    out_ref : (Tc, Bt, o_pad) per-step log-softmax (cols [0, n_out) valid)
    hfin_ref: (Bt, H)         final hidden (written only at the real last step)
    h_scr   : (Bt, H)         f32 scratch carrying the hidden across chunks
    """
    tc = pl.program_id(1)

    @pl.when(tc == 0)
    def _():
        h_scr[...] = h0_ref[...]

    # Loop-invariant hoists (JAX does not CSE broadcast_in_dim).
    wx = wx_ref[...]
    wh = wh_ref[...]
    bt = h0_ref.shape[0]
    bias = jnp.broadcast_to(b_ref[...], (bt, b_ref.shape[1]))

    def step(s, h):
        x = x_ref[s]                                           # (Bt, I) bf16
        acc = jnp.dot(x, wx, preferred_element_type=jnp.float32)
        acc = acc + jnp.dot(h.astype(wh.dtype), wh,
                            preferred_element_type=jnp.float32)
        acc = acc + bias                                       # padded cols = -1e30

        logits = acc[:, :o_pad]                                # lane-aligned slices
        new_h = acc[:, o_pad:]

        # Log-softmax; padded lanes are ~-1e30 so exp underflows to exactly 0.
        m = jnp.max(logits, axis=1, keepdims=True)
        shifted = logits - m
        lse = jnp.log(jnp.sum(jnp.exp(shifted), axis=1, keepdims=True))
        out_ref[s] = (shifted - lse).astype(out_ref.dtype)

        @pl.when(tc * t_chunk + s == t_last)
        def _():
            hfin_ref[...] = new_h.astype(hfin_ref.dtype)

        return new_h

    h_scr[...] = lax.fori_loop(0, t_chunk, step, h_scr[...], unroll=True)


def rnn_sequence(x_seq, h0, w_x, w_h, b, *, n_out, o_pad=128, t_chunk=None):
    """Run the whole sequence in ONE pallas_call.

    x_seq: (T, B, I) f32, h0: (B, H) f32.
    Returns (log-softmax outputs (T, B, n_out), final hidden (B, H)).
    """
    T, B, I = x_seq.shape
    H = h0.shape[1]
    P = o_pad + H

    # Batch tiling: sublane aligned; cap at 128 so >=2 tiles appear sooner
    # (v7x dual-TensorCore sharding via the "parallel" axis).
    b_tile = min(_round_up(B, 8), 128)
    b_pad = _round_up(B, b_tile)
    nb = b_pad // b_tile

    # Time chunking: amortize the per-grid-step overhead over Tc steps.
    if t_chunk is None:
        t_chunk = min(T, 16)
    t_pad = _round_up(T, t_chunk)
    nt = t_pad // t_chunk

    # Stream x in bf16 (MXU consumes bf16 anyway) -> half the HBM traffic.
    x_seq = x_seq.astype(jnp.bfloat16)
    pad_t, pad_b = t_pad - T, b_pad - B
    if pad_t or pad_b:
        x_seq = jnp.pad(x_seq, ((0, pad_t), (0, pad_b), (0, 0)))
    if pad_b:
        h0 = jnp.pad(h0, ((0, pad_b), (0, 0)))

    # Explicit VMEM budget: double-buffered x/out chunks + resident weights.
    vmem_bytes = (2 * t_chunk * b_tile * I * 2          # x chunk (bf16) x2 bufs
                  + 2 * t_chunk * b_tile * o_pad * 4    # out chunk (f32) x2 bufs
                  + 2 * (I * P * 2 + H * P * 2 + P * 4)  # resident weights/bias
                  + 2 * 2 * b_tile * H * 4              # h0 + hfin blocks
                  + b_tile * H * 4)                     # h scratch
    vmem_limit = int(min(max(2 * vmem_bytes + (2 << 20), 8 << 20), 64 << 20))

    kernel = functools.partial(rnn_seq_kernel, t_chunk=t_chunk,
                               t_last=T - 1, o_pad=o_pad)

    out_seq, h_fin = pl.pallas_call(
        kernel,
        out_shape=(
            jax.ShapeDtypeStruct((t_pad, b_pad, o_pad), jnp.float32),
            jax.ShapeDtypeStruct((b_pad, H), jnp.float32),
        ),
        grid_spec=pltpu.PrefetchScalarGridSpec(
            num_scalar_prefetch=0,
            grid=(nb, nt),
            in_specs=[
                pl.BlockSpec((t_chunk, b_tile, I), lambda bi, t: (t, bi, 0)),
                pl.BlockSpec((b_tile, H), lambda bi, t: (bi, 0)),
                pl.BlockSpec((I, P), lambda bi, t: (0, 0)),    # resident
                pl.BlockSpec((H, P), lambda bi, t: (0, 0)),    # resident
                pl.BlockSpec((1, P), lambda bi, t: (0, 0)),    # resident
            ],
            out_specs=(
                pl.BlockSpec((t_chunk, b_tile, o_pad), lambda bi, t: (t, bi, 0)),
                pl.BlockSpec((b_tile, H), lambda bi, t: (bi, 0)),
            ),
            scratch_shapes=[pltpu.VMEM((b_tile, H), jnp.float32)],
        ),
        compiler_params=pltpu.CompilerParams(
            dimension_semantics=("parallel", "arbitrary"),
            vmem_limit_bytes=vmem_limit),
    )(x_seq, h0, w_x, w_h, b)

    return out_seq[:T, :B, :n_out], h_fin[:B]


def rnn_forward(input_tensor, hidden_tensor, w_x, w_h, b, *, n_out, o_pad=128):
    """Single-step API matching the PyTorch module's forward exactly."""
    out_seq, hidden = rnn_sequence(input_tensor[None], hidden_tensor,
                                   w_x, w_h, b, n_out=n_out, o_pad=o_pad)
    return out_seq[0], hidden


def init_params(key, input_size, hidden_size, output_size, o_pad=128):
    """PyTorch nn.Linear-style init packed into the fused layout:
       columns [0, O) are i2o, [o_pad, o_pad+H) are i2h.  Padded bias columns
       hold -1e30 (bakes the log-softmax padding mask into the bias).
       Weights bf16 (MXU), fused bias f32 (VPU epilogue)."""
    fan_in = input_size + hidden_size
    bound = 1.0 / jnp.sqrt(jnp.float32(fan_in))
    k1, k2, k3, k4 = jax.random.split(key, 4)
    w_o = jax.random.uniform(k1, (fan_in, output_size), jnp.float32, -bound, bound)
    b_o = jax.random.uniform(k2, (output_size,), jnp.float32, -bound, bound)
    w_h = jax.random.uniform(k3, (fan_in, hidden_size), jnp.float32, -bound, bound)
    b_h = jax.random.uniform(k4, (hidden_size,), jnp.float32, -bound, bound)

    w_o_pad = jnp.pad(w_o, ((0, 0), (0, o_pad - output_size)))
    b_o_pad = jnp.concatenate(
        [b_o, jnp.full((o_pad - output_size,), -1e30, jnp.float32)])
    w_cat = jnp.concatenate([w_o_pad, w_h], axis=1)            # (C, o_pad + H)
    b_cat = jnp.concatenate([b_o_pad, b_h])[None, :]           # (1, o_pad + H)

    w_x = w_cat[:input_size].astype(jnp.bfloat16)              # rows hit by x
    w_hh = w_cat[input_size:].astype(jnp.bfloat16)             # rows hit by h
    return w_x, w_hh, b_cat.astype(jnp.float32)


def _ref_step(x, h, w_x, w_h, b, n_out, o_pad=128):
    """Pure-JAX reference for one step (same bf16-on-MXU arithmetic).
    Only the real bias columns are used, so the -1e30 padding is irrelevant."""
    acc = jnp.dot(x.astype(jnp.bfloat16), w_x, preferred_element_type=jnp.float32)
    acc = acc + jnp.dot(h.astype(jnp.bfloat16), w_h, preferred_element_type=jnp.float32)
    acc = acc + b
    out = jax.nn.log_softmax(acc[:, :n_out], axis=1)
    return out, acc[:, o_pad:]


if __name__ == "__main__":
    batch = 2
    input_size = 64
    hidden_size = 128
    output_size = 16
    seq_len = 8

    key = jax.random.PRNGKey(0)
    kx, kp = jax.random.split(key)
    x_seq = jax.random.normal(kx, (seq_len, batch, input_size), jnp.float32)
    h0 = jnp.zeros((batch, hidden_size), jnp.float32)   # module's init_hidden, batched

    w_x, w_hh, b = init_params(kp, input_size, hidden_size, output_size)

    # Fused whole-sequence kernel: one pallas_call for all T steps.
    run_seq = jax.jit(functools.partial(rnn_sequence, n_out=output_size))
    out_seq, h_fin = run_seq(x_seq, h0, w_x, w_hh, b)
    jax.block_until_ready((out_seq, h_fin))

    # Single-step call identical to the PyTorch module's forward.
    run_step = jax.jit(functools.partial(rnn_forward, n_out=output_size))
    out0, h1 = run_step(x_seq[0], h0, w_x, w_hh, b)
    jax.block_until_ready((out0, h1))

    # Pure-JAX reference.
    h_ref = h0
    outs_ref = []
    for t in range(seq_len):
        o_ref, h_ref = _ref_step(x_seq[t], h_ref, w_x, w_hh, b, output_size)
        outs_ref.append(o_ref)
    out_ref = jnp.stack(outs_ref)
    out0_ref, h1_ref = _ref_step(x_seq[0], h0, w_x, w_hh, b, output_size)

    assert out_seq.shape == (seq_len, batch, output_size)
    assert h_fin.shape == (batch, hidden_size)
    assert jnp.allclose(out_seq, out_ref, atol=2e-3), "log-softmax sequence mismatch"
    assert jnp.allclose(h_fin, h_ref, atol=2e-3), "final hidden mismatch"
    assert jnp.allclose(out0, out0_ref, atol=2e-3), "single-step output mismatch"
    assert jnp.allclose(h1, h1_ref, atol=2e-3), "single-step hidden mismatch"

    print("KERNEL_OK")
</pallas_src>

<mosaic_0001>
module attributes {stable_mosaic.version = 11 : i64} {
  func.func @rnn_seq_kernel(%arg0: i32, %arg1: i32, %arg2: memref<8x8x64xbf16, #tpu.memory_space<vmem>>, %arg3: memref<8x128xf32, #tpu.memory_space<vmem>>, %arg4: memref<64x256xbf16, #tpu.memory_space<vmem>>, %arg5: memref<128x256xbf16, #tpu.memory_space<vmem>>, %arg6: memref<1x256xf32, #tpu.memory_space<vmem>>, %arg7: memref<8x8x128xf32, #tpu.memory_space<vmem>>, %arg8: memref<8x128xf32, #tpu.memory_space<vmem>>, %arg9: memref<8x128xf32, #tpu.memory_space<vmem>>) attributes {dimension_semantics = [#tpu.dimension_semantics<parallel>, #tpu.dimension_semantics<arbitrary>], iteration_bounds = array<i64: 1, 1>, scalar_prefetch = 0 : i64, scratch_operands = 1 : i64, tpu.core_type = #tpu.core_type<tc>, window_params = [{transform_indices = @transform_0, window_bounds = array<i64: 8, 8, 64>}, {transform_indices = @transform_1, window_bounds = array<i64: 8, 128>}, {pipeline_mode = #tpu.pipeline_mode<synchronous>, transform_indices = @transform_2, window_bounds = array<i64: 64, 256>}, {pipeline_mode = #tpu.pipeline_mode<synchronous>, transform_indices = @transform_3, window_bounds = array<i64: 128, 256>}, {pipeline_mode = #tpu.pipeline_mode<synchronous>, transform_indices = @transform_4, window_bounds = array<i64: 1, 256>}, {transform_indices = @transform_5, window_bounds = array<i64: 8, 8, 128>}, {transform_indices = @transform_6, window_bounds = array<i64: 8, 128>}]} {
    %c0_i32 = arith.constant 0 : i32
    %0 = arith.cmpi eq, %arg1, %c0_i32 : i32
    %1 = arith.extui %0 : i1 to i32
    %c0_i32_0 = arith.constant 0 : i32
    %2 = arith.cmpi ne, %1, %c0_i32_0 : i32
    scf.if %2 {
      %c0_98 = arith.constant 0 : index
      %c0_99 = arith.constant 0 : index
      %242 = vector.load %arg3[%c0_98, %c0_99] : memref<8x128xf32, #tpu.memory_space<vmem>>, vector<8x128xf32>
      %c0_100 = arith.constant 0 : index
      %c0_101 = arith.constant 0 : index
      %243 = vector.load %arg9[%c0_100, %c0_101] : memref<8x128xf32, #tpu.memory_space<vmem>>, vector<8x128xf32>
      tpu.vector_store %arg9[%c0_100, %c0_101], %242 {strides = array<i32>} : memref<8x128xf32, #tpu.memory_space<vmem>>, vector<8x128xf32>,
    } else {
    }
    %c0 = arith.constant 0 : index
    %c0_1 = arith.constant 0 : index
    %3 = vector.load %arg4[%c0, %c0_1] : memref<64x256xbf16, #tpu.memory_space<vmem>>, vector<64x256xbf16>
    %c0_2 = arith.constant 0 : index
    %c0_3 = arith.constant 0 : index
    %4 = vector.load %arg5[%c0_2, %c0_3] : memref<128x256xbf16, #tpu.memory_space<vmem>>, vector<128x256xbf16>
    %c0_4 = arith.constant 0 : index
    %c0_5 = arith.constant 0 : index
    %5 = vector.load %arg6[%c0_4, %c0_5] : memref<1x256xf32, #tpu.memory_space<vmem>>, vector<1x256xf32>
    %6 = vector.shape_cast %5 : vector<1x256xf32> to vector<1x256xf32>
    %7 = vector.broadcast %6 : vector<1x256xf32> to vector<8x256xf32>
    %c0_6 = arith.constant 0 : index
    %c0_7 = arith.constant 0 : index
    %8 = vector.load %arg9[%c0_6, %c0_7] : memref<8x128xf32, #tpu.memory_space<vmem>>, vector<8x128xf32>
    %c0_i32_8 = arith.constant 0 : i32
    %9 = arith.index_cast %c0_i32_8 : i32 to index
    %c0_9 = arith.constant 0 : index
    %c0_10 = arith.constant 0 : index
    %10 = vector.load %arg2[%9, %c0_9, %c0_10] : memref<8x8x64xbf16, #tpu.memory_space<vmem>>, vector<1x8x64xbf16>
    %11 = vector.shape_cast %10 : vector<1x8x64xbf16> to vector<8x64xbf16>
    %cst = arith.constant dense<0.000000e+00> : vector<8x256xf32>
    %12 = tpu.matmul %11, %3, %cst {dimension_numbers = #tpu.dot_dimension_numbers<[1], [0], [0], [1], [0, 0, 1, 1], [], []>} : vector<8x64xbf16>, vector<64x256xbf16>, vector<8x256xf32> -> vector<8x256xf32>
    %13 = arith.truncf %8 : vector<8x128xf32> to vector<8x128xbf16>
    %cst_11 = arith.constant dense<0.000000e+00> : vector<8x256xf32>
    %14 = tpu.matmul %13, %4, %cst_11 {dimension_numbers = #tpu.dot_dimension_numbers<[1], [0], [0], [1], [0, 0, 1, 1], [], []>} : vector<8x128xbf16>, vector<128x256xbf16>, vector<8x256xf32> -> vector<8x256xf32>
    %15 = arith.addf %12, %14 : vector<8x256xf32>
    %16 = arith.addf %15, %7 : vector<8x256xf32>
    %17 = vector.extract_strided_slice %16 {offsets = [0, 0], sizes = [8, 128], strides = [1, 1]} : vector<8x256xf32> to vector<8x128xf32>
    %18 = vector.extract_strided_slice %16 {offsets = [0, 128], sizes = [8, 128], strides = [1, 1]} : vector<8x256xf32> to vector<8x128xf32>
    %cst_12 = arith.constant dense<0xFF800000> : vector<8xf32>
    %19 = vector.multi_reduction <maximumf>, %17, %cst_12 [1] : vector<8x128xf32> to vector<8xf32>
    %20 = vector.shape_cast %19 : vector<8xf32> to vector<8x1xf32>
    %21 = vector.broadcast %20 : vector<8x1xf32> to vector<8x128xf32>
    %22 = arith.subf %17, %21 : vector<8x128xf32>
    %23 = math.exp %22 : vector<8x128xf32>
    %cst_13 = arith.constant dense<0.000000e+00> : vector<8xf32>
    %24 = vector.multi_reduction <add>, %23, %cst_13 [1] : vector<8x128xf32> to vector<8xf32>
    %25 = vector.shape_cast %24 : vector<8xf32> to vector<8x1xf32>
    %26 = math.log %25 : vector<8x1xf32>
    %27 = vector.broadcast %26 : vector<8x1xf32> to vector<8x128xf32>
    %28 = arith.subf %22, %27 : vector<8x128xf32>
    %29 = arith.index_cast %c0_i32_8 : i32 to index
    %c0_14 = arith.constant 0 : index
    %c0_15 = arith.constant 0 : index
    %30 = vector.load %arg7[%29, %c0_14, %c0_15] : memref<8x8x128xf32, #tpu.memory_space<vmem>>, vector<1x8x128xf32>
    %31 = vector.shape_cast %30 : vector<1x8x128xf32> to vector<8x128xf32>
    %32 = vector.shape_cast %28 : vector<8x128xf32> to vector<1x8x128xf32>
    tpu.vector_store %arg7[%29, %c0_14, %c0_15], %32 {strides = array<i32>} : memref<8x8x128xf32, #tpu.memory_space<vmem>>, vector<1x8x128xf32>,
    %c8_i32 = arith.constant 8 : i32
    %33 = arith.muli %arg1, %c8_i32 : i32
    %34 = arith.addi %33, %c0_i32_8 : i32
    %c7_i32 = arith.constant 7 : i32
    %35 = arith.cmpi eq, %34, %c7_i32 : i32
    %36 = arith.extui %35 : i1 to i32
    %c0_i32_16 = arith.constant 0 : i32
    %37 = arith.cmpi ne, %36, %c0_i32_16 : i32
    scf.if %37 {
      %c0_98 = arith.constant 0 : index
      %c0_99 = arith.constant 0 : index
      %242 = vector.load %arg8[%c0_98, %c0_99] : memref<8x128xf32, #tpu.memory_space<vmem>>, vector<8x128xf32>
      tpu.vector_store %arg8[%c0_98, %c0_99], %18 {strides = array<i32>} : memref<8x128xf32, #tpu.memory_space<vmem>>, vector<8x128xf32>,
    } else {
    }
    %c1_i32 = arith.constant 1 : i32
    %38 = arith.index_cast %c1_i32 : i32 to index
    %c0_17 = arith.constant 0 : index
    %c0_18 = arith.constant 0 : index
    %39 = vector.load %arg2[%38, %c0_17, %c0_18] : memref<8x8x64xbf16, #tpu.memory_space<vmem>>, vector<1x8x64xbf16>
    %40 = vector.shape_cast %39 : vector<1x8x64xbf16> to vector<8x64xbf16>
    %cst_19 = arith.constant dense<0.000000e+00> : vector<8x256xf32>
    %41 = tpu.matmul %40, %3, %cst_19 {dimension_numbers = #tpu.dot_dimension_numbers<[1], [0], [0], [1], [0, 0, 1, 1], [], []>} : vector<8x64xbf16>, vector<64x256xbf16>, vector<8x256xf32> -> vector<8x256xf32>
    %42 = arith.truncf %18 : vector<8x128xf32> to vector<8x128xbf16>
    %cst_20 = arith.constant dense<0.000000e+00> : vector<8x256xf32>
    %43 = tpu.matmul %42, %4, %cst_20 {dimension_numbers = #tpu.dot_dimension_numbers<[1], [0], [0], [1], [0, 0, 1, 1], [], []>} : vector<8x128xbf16>, vector<128x256xbf16>, vector<8x256xf32> -> vector<8x256xf32>
    %44 = arith.addf %41, %43 : vector<8x256xf32>
    %45 = arith.addf %44, %7 : vector<8x256xf32>
    %46 = vector.extract_strided_slice %45 {offsets = [0, 0], sizes = [8, 128], strides = [1, 1]} : vector<8x256xf32> to vector<8x128xf32>
    %47 = vector.extract_strided_slice %45 {offsets = [0, 128], sizes = [8, 128], strides = [1, 1]} : vector<8x256xf32> to vector<8x128xf32>
    %cst_21 = arith.constant dense<0xFF800000> : vector<8xf32>
    %48 = vector.multi_reduction <maximumf>, %46, %cst_21 [1] : vector<8x128xf32> to vector<8xf32>
    %49 = vector.shape_cast %48 : vector<8xf32> to vector<8x1xf32>
    %50 = vector.broadcast %49 : vector<8x1xf32> to vector<8x128xf32>
    %51 = arith.subf %46, %50 : vector<8x128xf32>
    %52 = math.exp %51 : vector<8x128xf32>
    %cst_22 = arith.constant dense<0.000000e+00> : vector<8xf32>
    %53 = vector.multi_reduction <add>, %52, %cst_22 [1] : vector<8x128xf32> to vector<8xf32>
    %54 = vector.shape_cast %53 : vector<8xf32> to vector<8x1xf32>
    %55 = math.log %54 : vector<8x1xf32>
    %56 = vector.broadcast %55 : vector<8x1xf32> to vector<8x128xf32>
    %57 = arith.subf %51, %56 : vector<8x128xf32>
    %58 = arith.index_cast %c1_i32 : i32 to index
    %c0_23 = arith.constant 0 : index
    %c0_24 = arith.constant 0 : index
    %59 = vector.load %arg7[%58, %c0_23, %c0_24] : memref<8x8x128xf32, #tpu.memory_space<vmem>>, vector<1x8x128xf32>
    %60 = vector.shape_cast %59 : vector<1x8x128xf32> to vector<8x128xf32>
    %61 = vector.shape_cast %57 : vector<8x128xf32> to vector<1x8x128xf32>
    tpu.vector_store %arg7[%58, %c0_23, %c0_24], %61 {strides = array<i32>} : memref<8x8x128xf32, #tpu.memory_space<vmem>>, vector<1x8x128xf32>,
    %c8_i32_25 = arith.constant 8 : i32
    %62 = arith.muli %arg1, %c8_i32_25 : i32
    %63 = arith.addi %62, %c1_i32 : i32
    %c7_i32_26 = arith.constant 7 : i32
    %64 = arith.cmpi eq, %63, %c7_i32_26 : i32
    %65 = arith.extui %64 : i1 to i32
    %c0_i32_27 = arith.constant 0 : i32
    %66 = arith.cmpi ne, %65, %c0_i32_27 : i32
    scf.if %66 {
      %c0_98 = arith.constant 0 : index
      %c0_99 = arith.constant 0 : index
      %242 = vector.load %arg8[%c0_98, %c0_99] : memref<8x128xf32, #tpu.memory_space<vmem>>, vector<8x128xf32>
      tpu.vector_store %arg8[%c0_98, %c0_99], %47 {strides = array<i32>} : memref<8x128xf32, #tpu.memory_space<vmem>>, vector<8x128xf32>,
    } else {
    }
    %c2_i32 = arith.constant 2 : i32
    %67 = arith.index_cast %c2_i32 : i32 to index
    %c0_28 = arith.constant 0 : index
    %c0_29 = arith.constant 0 : index
    %68 = vector.load %arg2[%67, %c0_28, %c0_29] : memref<8x8x64xbf16, #tpu.memory_space<vmem>>, vector<1x8x64xbf16>
    %69 = vector.shape_cast %68 : vector<1x8x64xbf16> to vector<8x64xbf16>
    %cst_30 = arith.constant dense<0.000000e+00> : vector<8x256xf32>
    %70 = tpu.matmul %69, %3, %cst_30 {dimension_numbers = #tpu.dot_dimension_numbers<[1], [0], [0], [1], [0, 0, 1, 1], [], []>} : vector<8x64xbf16>, vector<64x256xbf16>, vector<8x256xf32> -> vector<8x256xf32>
    %71 = arith.truncf %47 : vector<8x128xf32> to vector<8x128xbf16>
    %cst_31 = arith.constant dense<0.000000e+00> : vector<8x256xf32>
    %72 = tpu.matmul %71, %4, %cst_31 {dimension_numbers = #tpu.dot_dimension_numbers<[1], [0], [0], [1], [0, 0, 1, 1], [], []>} : vector<8x128xbf16>, vector<128x256xbf16>, vector<8x256xf32> -> vector<8x256xf32>
    %73 = arith.addf %70, %72 : vector<8x256xf32>
    %74 = arith.addf %73, %7 : vector<8x256xf32>
    %75 = vector.extract_strided_slice %74 {offsets = [0, 0], sizes = [8, 128], strides = [1, 1]} : vector<8x256xf32> to vector<8x128xf32>
    %76 = vector.extract_strided_slice %74 {offsets = [0, 128], sizes = [8, 128], strides = [1, 1]} : vector<8x256xf32> to vector<8x128xf32>
    %cst_32 = arith.constant dense<0xFF800000> : vector<8xf32>
    %77 = vector.multi_reduction <maximumf>, %75, %cst_32 [1] : vector<8x128xf32> to vector<8xf32>
    %78 = vector.shape_cast %77 : vector<8xf32> to vector<8x1xf32>
    %79 = vector.broadcast %78 : vector<8x1xf32> to vector<8x128xf32>
    %80 = arith.subf %75, %79 : vector<8x128xf32>
    %81 = math.exp %80 : vector<8x128xf32>
    %cst_33 = arith.constant dense<0.000000e+00> : vector<8xf32>
    %82 = vector.multi_reduction <add>, %81, %cst_33 [1] : vector<8x128xf32> to vector<8xf32>
    %83 = vector.shape_cast %82 : vector<8xf32> to vector<8x1xf32>
    %84 = math.log %83 : vector<8x1xf32>
    %85 = vector.broadcast %84 : vector<8x1xf32> to vector<8x128xf32>
    %86 = arith.subf %80, %85 : vector<8x128xf32>
    %87 = arith.index_cast %c2_i32 : i32 to index
    %c0_34 = arith.constant 0 : index
    %c0_35 = arith.constant 0 : index
    %88 = vector.load %arg7[%87, %c0_34, %c0_35] : memref<8x8x128xf32, #tpu.memory_space<vmem>>, vector<1x8x128xf32>
    %89 = vector.shape_cast %88 : vector<1x8x128xf32> to vector<8x128xf32>
    %90 = vector.shape_cast %86 : vector<8x128xf32> to vector<1x8x128xf32>
    tpu.vector_store %arg7[%87, %c0_34, %c0_35], %90 {strides = array<i32>} : memref<8x8x128xf32, #tpu.memory_space<vmem>>, vector<1x8x128xf32>,
    %c8_i32_36 = arith.constant 8 : i32
    %91 = arith.muli %arg1, %c8_i32_36 : i32
    %92 = arith.addi %91, %c2_i32 : i32
    %c7_i32_37 = arith.constant 7 : i32
    %93 = arith.cmpi eq, %92, %c7_i32_37 : i32
    %94 = arith.extui %93 : i1 to i32
    %c0_i32_38 = arith.constant 0 : i32
    %95 = arith.cmpi ne, %94, %c0_i32_38 : i32
    scf.if %95 {
      %c0_98 = arith.constant 0 : index
      %c0_99 = arith.constant 0 : index
      %242 = vector.load %arg8[%c0_98, %c0_99] : memref<8x128xf32, #tpu.memory_space<vmem>>, vector<8x128xf32>
      tpu.vector_store %arg8[%c0_98, %c0_99], %76 {strides = array<i32>} : memref<8x128xf32, #tpu.memory_space<vmem>>, vector<8x128xf32>,
    } else {
    }
    %c3_i32 = arith.constant 3 : i32
    %96 = arith.index_cast %c3_i32 : i32 to index
    %c0_39 = arith.constant 0 : index
    %c0_40 = arith.constant 0 : index
    %97 = vector.load %arg2[%96, %c0_39, %c0_40] : memref<8x8x64xbf16, #tpu.memory_space<vmem>>, vector<1x8x64xbf16>
    %98 = vector.shape_cast %97 : vector<1x8x64xbf16> to vector<8x64xbf16>
    %cst_41 = arith.constant dense<0.000000e+00> : vector<8x256xf32>
    %99 = tpu.matmul %98, %3, %cst_41 {dimension_numbers = #tpu.dot_dimension_numbers<[1], [0], [0], [1], [0, 0, 1, 1], [], []>} : vector<8x64xbf16>, vector<64x256xbf16>, vector<8x256xf32> -> vector<8x256xf32>
    %100 = arith.truncf %76 : vector<8x128xf32> to vector<8x128xbf16>
    %cst_42 = arith.constant dense<0.000000e+00> : vector<8x256xf32>
    %101 = tpu.matmul %100, %4, %cst_42 {dimension_numbers = #tpu.dot_dimension_numbers<[1], [0], [0], [1], [0, 0, 1, 1], [], []>} : vector<8x128xbf16>, vector<128x256xbf16>, vector<8x256xf32> -> vector<8x256xf32>
    %102 = arith.addf %99, %101 : vector<8x256xf32>
    %103 = arith.addf %102, %7 : vector<8x256xf32>
    %104 = vector.extract_strided_slice %103 {offsets = [0, 0], sizes = [8, 128], strides = [1, 1]} : vector<8x256xf32> to vector<8x128xf32>
    %105 = vector.extract_strided_slice %103 {offsets = [0, 128], sizes = [8, 128], strides = [1, 1]} : vector<8x256xf32> to vector<8x128xf32>
    %cst_43 = arith.constant dense<0xFF800000> : vector<8xf32>
    %106 = vector.multi_reduction <maximumf>, %104, %cst_43 [1] : vector<8x128xf32> to vector<8xf32>
    %107 = vector.shape_cast %106 : vector<8xf32> to vector<8x1xf32>
    %108 = vector.broadcast %107 : vector<8x1xf32> to vector<8x128xf32>
    %109 = arith.subf %104, %108 : vector<8x128xf32>
    %110 = math.exp %109 : vector<8x128xf32>
    %cst_44 = arith.constant dense<0.000000e+00> : vector<8xf32>
    %111 = vector.multi_reduction <add>, %110, %cst_44 [1] : vector<8x128xf32> to vector<8xf32>
    %112 = vector.shape_cast %111 : vector<8xf32> to vector<8x1xf32>
    %113 = math.log %112 : vector<8x1xf32>
    %114 = vector.broadcast %113 : vector<8x1xf32> to vector<8x128xf32>
    %115 = arith.subf %109, %114 : vector<8x128xf32>
    %116 = arith.index_cast %c3_i32 : i32 to index
    %c0_45 = arith.constant 0 : index
    %c0_46 = arith.constant 0 : index
    %117 = vector.load %arg7[%116, %c0_45, %c0_46] : memref<8x8x128xf32, #tpu.memory_space<vmem>>, vector<1x8x128xf32>
    %118 = vector.shape_cast %117 : vector<1x8x128xf32> to vector<8x128xf32>
    %119 = vector.shape_cast %115 : vector<8x128xf32> to vector<1x8x128xf32>
    tpu.vector_store %arg7[%116, %c0_45, %c0_46], %119 {strides = array<i32>} : memref<8x8x128xf32, #tpu.memory_space<vmem>>, vector<1x8x128xf32>,
    %c8_i32_47 = arith.constant 8 : i32
    %120 = arith.muli %arg1, %c8_i32_47 : i32
    %121 = arith.addi %120, %c3_i32 : i32
    %c7_i32_48 = arith.constant 7 : i32
    %122 = arith.cmpi eq, %121, %c7_i32_48 : i32
    %123 = arith.extui %122 : i1 to i32
    %c0_i32_49 = arith.constant 0 : i32
    %124 = arith.cmpi ne, %123, %c0_i32_49 : i32
    scf.if %124 {
      %c0_98 = arith.constant 0 : index
      %c0_99 = arith.constant 0 : index
      %242 = vector.load %arg8[%c0_98, %c0_99] : memref<8x128xf32, #tpu.memory_space<vmem>>, vector<8x128xf32>
      tpu.vector_store %arg8[%c0_98, %c0_99], %105 {strides = array<i32>} : memref<8x128xf32, #tpu.memory_space<vmem>>, vector<8x128xf32>,
    } else {
    }
    %c4_i32 = arith.constant 4 : i32
    %125 = arith.index_cast %c4_i32 : i32 to index
    %c0_50 = arith.constant 0 : index
    %c0_51 = arith.constant 0 : index
    %126 = vector.load %arg2[%125, %c0_50, %c0_51] : memref<8x8x64xbf16, #tpu.memory_space<vmem>>, vector<1x8x64xbf16>
    %127 = vector.shape_cast %126 : vector<1x8x64xbf16> to vector<8x64xbf16>
    %cst_52 = arith.constant dense<0.000000e+00> : vector<8x256xf32>
    %128 = tpu.matmul %127, %3, %cst_52 {dimension_numbers = #tpu.dot_dimension_numbers<[1], [0], [0], [1], [0, 0, 1, 1], [], []>} : vector<8x64xbf16>, vector<64x256xbf16>, vector<8x256xf32> -> vector<8x256xf32>
    %129 = arith.truncf %105 : vector<8x128xf32> to vector<8x128xbf16>
    %cst_53 = arith.constant dense<0.000000e+00> : vector<8x256xf32>
    %130 = tpu.matmul %129, %4, %cst_53 {dimension_numbers = #tpu.dot_dimension_numbers<[1], [0], [0], [1], [0, 0, 1, 1], [], []>} : vector<8x128xbf16>, vector<128x256xbf16>, vector<8x256xf32> -> vector<8x256xf32>
    %131 = arith.addf %128, %130 : vector<8x256xf32>
    %132 = arith.addf %131, %7 : vector<8x256xf32>
    %133 = vector.extract_strided_slice %132 {offsets = [0, 0], sizes = [8, 128], strides = [1, 1]} : vector<8x256xf32> to vector<8x128xf32>
    %134 = vector.extract_strided_slice %132 {offsets = [0, 128], sizes = [8, 128], strides = [1, 1]} : vector<8x256xf32> to vector<8x128xf32>
    %cst_54 = arith.constant dense<0xFF800000> : vector<8xf32>
    %135 = vector.multi_reduction <maximumf>, %133, %cst_54 [1] : vector<8x128xf32> to vector<8xf32>
    %136 = vector.shape_cast %135 : vector<8xf32> to vector<8x1xf32>
    %137 = vector.broadcast %136 : vector<8x1xf32> to vector<8x128xf32>
    %138 = arith.subf %133, %137 : vector<8x128xf32>
    %139 = math.exp %138 : vector<8x128xf32>
    %cst_55 = arith.constant dense<0.000000e+00> : vector<8xf32>
    %140 = vector.multi_reduction <add>, %139, %cst_55 [1] : vector<8x128xf32> to vector<8xf32>
    %141 = vector.shape_cast %140 : vector<8xf32> to vector<8x1xf32>
    %142 = math.log %141 : vector<8x1xf32>
    %143 = vector.broadcast %142 : vector<8x1xf32> to vector<8x128xf32>
    %144 = arith.subf %138, %143 : vector<8x128xf32>
    %145 = arith.index_cast %c4_i32 : i32 to index
    %c0_56 = arith.constant 0 : index
    %c0_57 = arith.constant 0 : index
    %146 = vector.load %arg7[%145, %c0_56, %c0_57] : memref<8x8x128xf32, #tpu.memory_space<vmem>>, vector<1x8x128xf32>
    %147 = vector.shape_cast %146 : vector<1x8x128xf32> to vector<8x128xf32>
    %148 = vector.shape_cast %144 : vector<8x128xf32> to vector<1x8x128xf32>
    tpu.vector_store %arg7[%145, %c0_56, %c0_57], %148 {strides = array<i32>} : memref<8x8x128xf32, #tpu.memory_space<vmem>>, vector<1x8x128xf32>,
    %c8_i32_58 = arith.constant 8 : i32
    %149 = arith.muli %arg1, %c8_i32_58 : i32
    %150 = arith.addi %149, %c4_i32 : i32
    %c7_i32_59 = arith.constant 7 : i32
    %151 = arith.cmpi eq, %150, %c7_i32_59 : i32
    %152 = arith.extui %151 : i1 to i32
    %c0_i32_60 = arith.constant 0 : i32
    %153 = arith.cmpi ne, %152, %c0_i32_60 : i32
    scf.if %153 {
      %c0_98 = arith.constant 0 : index
      %c0_99 = arith.constant 0 : index
      %242 = vector.load %arg8[%c0_98, %c0_99] : memref<8x128xf32, #tpu.memory_space<vmem>>, vector<8x128xf32>
      tpu.vector_store %arg8[%c0_98, %c0_99], %134 {strides = array<i32>} : memref<8x128xf32, #tpu.memory_space<vmem>>, vector<8x128xf32>,
    } else {
    }
    %c5_i32 = arith.constant 5 : i32
    %154 = arith.index_cast %c5_i32 : i32 to index
    %c0_61 = arith.constant 0 : index
    %c0_62 = arith.constant 0 : index
    %155 = vector.load %arg2[%154, %c0_61, %c0_62] : memref<8x8x64xbf16, #tpu.memory_space<vmem>>, vector<1x8x64xbf16>
    %156 = vector.shape_cast %155 : vector<1x8x64xbf16> to vector<8x64xbf16>
    %cst_63 = arith.constant dense<0.000000e+00> : vector<8x256xf32>
    %157 = tpu.matmul %156, %3, %cst_63 {dimension_numbers = #tpu.dot_dimension_numbers<[1], [0], [0], [1], [0, 0, 1, 1], [], []>} : vector<8x64xbf16>, vector<64x256xbf16>, vector<8x256xf32> -> vector<8x256xf32>
    %158 = arith.truncf %134 : vector<8x128xf32> to vector<8x128xbf16>
    %cst_64 = arith.constant dense<0.000000e+00> : vector<8x256xf32>
    %159 = tpu.matmul %158, %4, %cst_64 {dimension_numbers = #tpu.dot_dimension_numbers<[1], [0], [0], [1], [0, 0, 1, 1], [], []>} : vector<8x128xbf16>, vector<128x256xbf16>, vector<8x256xf32> -> vector<8x256xf32>
    %160 = arith.addf %157, %159 : vector<8x256xf32>
    %161 = arith.addf %160, %7 : vector<8x256xf32>
    %162 = vector.extract_strided_slice %161 {offsets = [0, 0], sizes = [8, 128], strides = [1, 1]} : vector<8x256xf32> to vector<8x128xf32>
    %163 = vector.extract_strided_slice %161 {offsets = [0, 128], sizes = [8, 128], strides = [1, 1]} : vector<8x256xf32> to vector<8x128xf32>
    %cst_65 = arith.constant dense<0xFF800000> : vector<8xf32>
    %164 = vector.multi_reduction <maximumf>, %162, %cst_65 [1] : vector<8x128xf32> to vector<8xf32>
    %165 = vector.shape_cast %164 : vector<8xf32> to vector<8x1xf32>
    %166 = vector.broadcast %165 : vector<8x1xf32> to vector<8x128xf32>
    %167 = arith.subf %162, %166 : vector<8x128xf32>
    %168 = math.exp %167 : vector<8x128xf32>
    %cst_66 = arith.constant dense<0.000000e+00> : vector<8xf32>
    %169 = vector.multi_reduction <add>, %168, %cst_66 [1] : vector<8x128xf32> to vector<8xf32>
    %170 = vector.shape_cast %169 : vector<8xf32> to vector<8x1xf32>
    %171 = math.log %170 : vector<8x1xf32>
    %172 = vector.broadcast %171 : vector<8x1xf32> to vector<8x128xf32>
    %173 = arith.subf %167, %172 : vector<8x128xf32>
    %174 = arith.index_cast %c5_i32 : i32 to index
    %c0_67 = arith.constant 0 : index
    %c0_68 = arith.constant 0 : index
    %175 = vector.load %arg7[%174, %c0_67, %c0_68] : memref<8x8x128xf32, #tpu.memory_space<vmem>>, vector<1x8x128xf32>
    %176 = vector.shape_cast %175 : vector<1x8x128xf32> to vector<8x128xf32>
    %177 = vector.shape_cast %173 : vector<8x128xf32> to vector<1x8x128xf32>
    tpu.vector_store %arg7[%174, %c0_67, %c0_68], %177 {strides = array<i32>} : memref<8x8x128xf32, #tpu.memory_space<vmem>>, vector<1x8x128xf32>,
    %c8_i32_69 = arith.constant 8 : i32
    %178 = arith.muli %arg1, %c8_i32_69 : i32
    %179 = arith.addi %178, %c5_i32 : i32
    %c7_i32_70 = arith.constant 7 : i32
    %180 = arith.cmpi eq, %179, %c7_i32_70 : i32
    %181 = arith.extui %180 : i1 to i32
    %c0_i32_71 = arith.constant 0 : i32
    %182 = arith.cmpi ne, %181, %c0_i32_71 : i32
    scf.if %182 {
      %c0_98 = arith.constant 0 : index
      %c0_99 = arith.constant 0 : index
      %242 = vector.load %arg8[%c0_98, %c0_99] : memref<8x128xf32, #tpu.memory_space<vmem>>, vector<8x128xf32>
      tpu.vector_store %arg8[%c0_98, %c0_99], %163 {strides = array<i32>} : memref<8x128xf32, #tpu.memory_space<vmem>>, vector<8x128xf32>,
    } else {
    }
    %c6_i32 = arith.constant 6 : i32
    %183 = arith.index_cast %c6_i32 : i32 to index
    %c0_72 = arith.constant 0 : index
    %c0_73 = arith.constant 0 : index
    %184 = vector.load %arg2[%183, %c0_72, %c0_73] : memref<8x8x64xbf16, #tpu.memory_space<vmem>>, vector<1x8x64xbf16>
    %185 = vector.shape_cast %184 : vector<1x8x64xbf16> to vector<8x64xbf16>
    %cst_74 = arith.constant dense<0.000000e+00> : vector<8x256xf32>
    %186 = tpu.matmul %185, %3, %cst_74 {dimension_numbers = #tpu.dot_dimension_numbers<[1], [0], [0], [1], [0, 0, 1, 1], [], []>} : vector<8x64xbf16>, vector<64x256xbf16>, vector<8x256xf32> -> vector<8x256xf32>
    %187 = arith.truncf %163 : vector<8x128xf32> to vector<8x128xbf16>
    %cst_75 = arith.constant dense<0.000000e+00> : vector<8x256xf32>
    %188 = tpu.matmul %187, %4, %cst_75 {dimension_numbers = #tpu.dot_dimension_numbers<[1], [0], [0], [1], [0, 0, 1, 1], [], []>} : vector<8x128xbf16>, vector<128x256xbf16>, vector<8x256xf32> -> vector<8x256xf32>
    %189 = arith.addf %186, %188 : vector<8x256xf32>
    %190 = arith.addf %189, %7 : vector<8x256xf32>
    %191 = vector.extract_strided_slice %190 {offsets = [0, 0], sizes = [8, 128], strides = [1, 1]} : vector<8x256xf32> to vector<8x128xf32>
    %192 = vector.extract_strided_slice %190 {offsets = [0, 128], sizes = [8, 128], strides = [1, 1]} : vector<8x256xf32> to vector<8x128xf32>
    %cst_76 = arith.constant dense<0xFF800000> : vector<8xf32>
    %193 = vector.multi_reduction <maximumf>, %191, %cst_76 [1] : vector<8x128xf32> to vector<8xf32>
    %194 = vector.shape_cast %193 : vector<8xf32> to vector<8x1xf32>
    %195 = vector.broadcast %194 : vector<8x1xf32> to vector<8x128xf32>
    %196 = arith.subf %191, %195 : vector<8x128xf32>
    %197 = math.exp %196 : vector<8x128xf32>
    %cst_77 = arith.constant dense<0.000000e+00> : vector<8xf32>
    %198 = vector.multi_reduction <add>, %197, %cst_77 [1] : vector<8x128xf32> to vector<8xf32>
    %199 = vector.shape_cast %198 : vector<8xf32> to vector<8x1xf32>
    %200 = math.log %199 : vector<8x1xf32>
    %201 = vector.broadcast %200 : vector<8x1xf32> to vector<8x128xf32>
    %202 = arith.subf %196, %201 : vector<8x128xf32>
    %203 = arith.index_cast %c6_i32 : i32 to index
    %c0_78 = arith.constant 0 : index
    %c0_79 = arith.constant 0 : index
    %204 = vector.load %arg7[%203, %c0_78, %c0_79] : memref<8x8x128xf32, #tpu.memory_space<vmem>>, vector<1x8x128xf32>
    %205 = vector.shape_cast %204 : vector<1x8x128xf32> to vector<8x128xf32>
    %206 = vector.shape_cast %202 : vector<8x128xf32> to vector<1x8x128xf32>
    tpu.vector_store %arg7[%203, %c0_78, %c0_79], %206 {strides = array<i32>} : memref<8x8x128xf32, #tpu.memory_space<vmem>>, vector<1x8x128xf32>,
    %c8_i32_80 = arith.constant 8 : i32
    %207 = arith.muli %arg1, %c8_i32_80 : i32
    %208 = arith.addi %207, %c6_i32 : i32
    %c7_i32_81 = arith.constant 7 : i32
    %209 = arith.cmpi eq, %208, %c7_i32_81 : i32
    %210 = arith.extui %209 : i1 to i32
    %c0_i32_82 = arith.constant 0 : i32
    %211 = arith.cmpi ne, %210, %c0_i32_82 : i32
    scf.if %211 {
      %c0_98 = arith.constant 0 : index
      %c0_99 = arith.constant 0 : index
      %242 = vector.load %arg8[%c0_98, %c0_99] : memref<8x128xf32, #tpu.memory_space<vmem>>, vector<8x128xf32>
      tpu.vector_store %arg8[%c0_98, %c0_99], %192 {strides = array<i32>} : memref<8x128xf32, #tpu.memory_space<vmem>>, vector<8x128xf32>,
    } else {
    }
    %c7_i32_83 = arith.constant 7 : i32
    %212 = arith.index_cast %c7_i32_83 : i32 to index
    %c0_84 = arith.constant 0 : index
    %c0_85 = arith.constant 0 : index
    %213 = vector.load %arg2[%212, %c0_84, %c0_85] : memref<8x8x64xbf16, #tpu.memory_space<vmem>>, vector<1x8x64xbf16>
    %214 = vector.shape_cast %213 : vector<1x8x64xbf16> to vector<8x64xbf16>
    %cst_86 = arith.constant dense<0.000000e+00> : vector<8x256xf32>
    %215 = tpu.matmul %214, %3, %cst_86 {dimension_numbers = #tpu.dot_dimension_numbers<[1], [0], [0], [1], [0, 0, 1, 1], [], []>} : vector<8x64xbf16>, vector<64x256xbf16>, vector<8x256xf32> -> vector<8x256xf32>
    %216 = arith.truncf %192 : vector<8x128xf32> to vector<8x128xbf16>
    %cst_87 = arith.constant dense<0.000000e+00> : vector<8x256xf32>
    %217 = tpu.matmul %216, %4, %cst_87 {dimension_numbers = #tpu.dot_dimension_numbers<[1], [0], [0], [1], [0, 0, 1, 1], [], []>} : vector<8x128xbf16>, vector<128x256xbf16>, vector<8x256xf32> -> vector<8x256xf32>
    %218 = arith.addf %215, %217 : vector<8x256xf32>
    %219 = arith.addf %218, %7 : vector<8x256xf32>
    %220 = vector.extract_strided_slice %219 {offsets = [0, 0], sizes = [8, 128], strides = [1, 1]} : vector<8x256xf32> to vector<8x128xf32>
    %221 = vector.extract_strided_slice %219 {offsets = [0, 128], sizes = [8, 128], strides = [1, 1]} : vector<8x256xf32> to vector<8x128xf32>
    %cst_88 = arith.constant dense<0xFF800000> : vector<8xf32>
    %222 = vector.multi_reduction <maximumf>, %220, %cst_88 [1] : vector<8x128xf32> to vector<8xf32>
    %223 = vector.shape_cast %222 : vector<8xf32> to vector<8x1xf32>
    %224 = vector.broadcast %223 : vector<8x1xf32> to vector<8x128xf32>
    %225 = arith.subf %220, %224 : vector<8x128xf32>
    %226 = math.exp %225 : vector<8x128xf32>
    %cst_89 = arith.constant dense<0.000000e+00> : vector<8xf32>
    %227 = vector.multi_reduction <add>, %226, %cst_89 [1] : vector<8x128xf32> to vector<8xf32>
    %228 = vector.shape_cast %227 : vector<8xf32> to vector<8x1xf32>
    %229 = math.log %228 : vector<8x1xf32>
    %230 = vector.broadcast %229 : vector<8x1xf32> to vector<8x128xf32>
    %231 = arith.subf %225, %230 : vector<8x128xf32>
    %232 = arith.index_cast %c7_i32_83 : i32 to index
    %c0_90 = arith.constant 0 : index
    %c0_91 = arith.constant 0 : index
    %233 = vector.load %arg7[%232, %c0_90, %c0_91] : memref<8x8x128xf32, #tpu.memory_space<vmem>>, vector<1x8x128xf32>
    %234 = vector.shape_cast %233 : vector<1x8x128xf32> to vector<8x128xf32>
    %235 = vector.shape_cast %231 : vector<8x128xf32> to vector<1x8x128xf32>
    tpu.vector_store %arg7[%232, %c0_90, %c0_91], %235 {strides = array<i32>} : memref<8x8x128xf32, #tpu.memory_space<vmem>>, vector<1x8x128xf32>,
    %c8_i32_92 = arith.constant 8 : i32
    %236 = arith.muli %arg1, %c8_i32_92 : i32
    %237 = arith.addi %236, %c7_i32_83 : i32
    %c7_i32_93 = arith.constant 7 : i32
    %238 = arith.cmpi eq, %237, %c7_i32_93 : i32
    %239 = arith.extui %238 : i1 to i32
    %c0_i32_94 = arith.constant 0 : i32
    %240 = arith.cmpi ne, %239, %c0_i32_94 : i32
    scf.if %240 {
      %c0_98 = arith.constant 0 : index
      %c0_99 = arith.constant 0 : index
      %242 = vector.load %arg8[%c0_98, %c0_99] : memref<8x128xf32, #tpu.memory_space<vmem>>, vector<8x128xf32>
      tpu.vector_store %arg8[%c0_98, %c0_99], %221 {strides = array<i32>} : memref<8x128xf32, #tpu.memory_space<vmem>>, vector<8x128xf32>,
    } else {
    }
    %c8_i32_95 = arith.constant 8 : i32
    %c0_96 = arith.constant 0 : index
    %c0_97 = arith.constant 0 : index
    %241 = vector.load %arg9[%c0_96, %c0_97] : memref<8x128xf32, #tpu.memory_space<vmem>>, vector<8x128xf32>
    tpu.vector_store %arg9[%c0_96, %c0_97], %221 {strides = array<i32>} : memref<8x128xf32, #tpu.memory_space<vmem>>, vector<8x128xf32>,
    return
  }
  func.func @transform_0(%arg0: i32, %arg1: i32) -> (i32, i32, i32) {
    %c0_i32 = arith.constant 0 : i32
    %c0_i32_0 = arith.constant 0 : i32
    return %arg1, %arg0, %c0_i32 : i32, i32, i32
  }
  func.func @transform_1(%arg0: i32, %arg1: i32) -> (i32, i32) {
    %c0_i32 = arith.constant 0 : i32
    %c0_i32_0 = arith.constant 0 : i32
    return %arg0, %c0_i32 : i32, i32
  }
  func.func @transform_2(%arg0: i32, %arg1: i32) -> (i32, i32) {
    %c0_i32 = arith.constant 0 : i32
    %c0_i32_0 = arith.constant 0 : i32
    %c0_i32_1 = arith.constant 0 : i32
    return %c0_i32, %c0_i32_0 : i32, i32
  }
  func.func @transform_3(%arg0: i32, %arg1: i32) -> (i32, i32) {
    %c0_i32 = arith.constant 0 : i32
    %c0_i32_0 = arith.constant 0 : i32
    %c0_i32_1 = arith.constant 0 : i32
    return %c0_i32, %c0_i32_0 : i32, i32
  }
  func.func @transform_4(%arg0: i32, %arg1: i32) -> (i32, i32) {
    %c0_i32 = arith.constant 0 : i32
    %c0_i32_0 = arith.constant 0 : i32
    %c0_i32_1 = arith.constant 0 : i32
    return %c0_i32, %c0_i32_0 : i32, i32
  }
  func.func @transform_5(%arg0: i32, %arg1: i32) -> (i32, i32, i32) {
    %c0_i32 = arith.constant 0 : i32
    %c0_i32_0 = arith.constant 0 : i32
    return %arg1, %arg0, %c0_i32 : i32, i32, i32
  }
  func.func @transform_6(%arg0: i32, %arg1: i32) -> (i32, i32) {
    %c0_i32 = arith.constant 0 : i32
    %c0_i32_0 = arith.constant 0 : i32
    return %arg0, %c0_i32 : i32, i32
  }
}

</mosaic_0001>

<llo_original>
// kernel: rnn_sequence.1
$region0: #{rnn_sequence.1}
  #allocation0 [shape = 'u32[]', space=smem, size = 0x4, offset = 0x4, fixed_abs, tag = 'smem constant byte address 0x4 - core index']
  #allocation1 [shape = 'u32[144,128]{1,0:T(1,128)}', space=vmem, size = 0x12000, scoped, tag = 'internal scratch']
  #allocation2 [shape = 'f32[8,128]{1,0:T(8,128)}', space=vmem, size = 0x1000, scoped, tag = 'scratch operand']
  %s0 = inlined_call_operand.vmem [shape: bf16[8,8,64], index: 0, kind: input, shape index: {}]
  %s1 = inlined_call_operand.vmem [shape: f32[8,128], index: 1, kind: input, shape index: {}]
  %s2 = inlined_call_operand.vmem [shape: bf16[64,256], index: 2, kind: input, shape index: {}]
  %s3 = inlined_call_operand.hbm [shape: bf16[128,256], index: 3, kind: input, shape index: {}]
  %s4 = inlined_call_operand.vmem [shape: f32[1,256], index: 4, kind: input, shape index: {}]
  %s5 = inlined_call_operand.vmem [shape: f32[8,8,128], index: 5, kind: output, shape index: {0}]
  %s6 = inlined_call_operand.vmem [shape: f32[8,128], index: 6, kind: output, shape index: {1}]
  %7 = xla_tuple %s5, %s6
  %s8 = sld [smem:[#allocation0]]
  $region78: #{rnn_sequence.1} parent=0
    _
  %s10 = ssub.s32 1, %s8
  %s11 = scalar_select 0, %s10, %s8
  $region1: #{rnn_sequence.1} parent=0
    #allocation3 [shape = 'u8[65536]{0}', space=vmem, size = 0x10000, scoped, tag = 'input window, operand 3, single buffered']
    #allocation4 [shape = 's32[1]{0}', space=sflag, size = 0x4, scoped, tag = 'scoped memory for rnn_sequence.1']
    %12 = vsyncpa [#allocation4], 0
    // Predicated region
    $region2: #{rnn_sequence.1} parent=1 // pred_check
      _
    $region3: #{rnn_sequence.1} parent=1 // pred_check_branch
      %14 = sbr.rel (0) target = $region5
    $region4: #{rnn_sequence.1} parent=1 // pred_region
      _
    $region5: #{rnn_sequence.1} parent=1 // pred_fallthru
      _
    // Predicated region
    $region6: #{rnn_sequence.1} parent=1 // pred_check
      _
    $region7: #{rnn_sequence.1} parent=1 // pred_check_branch
      %16 = sbr.rel (0) target = $region9
    $region8: #{rnn_sequence.1} parent=1 // pred_region
      _
    $region9: #{rnn_sequence.1} parent=1 // pred_fallthru
      _
    // Predicated region
    $region10: #{rnn_sequence.1} parent=1 // pred_check
      _
    $region11: #{rnn_sequence.1} parent=1 // pred_check_branch
      %18 = sbr.rel (0) target = $region13
    $region12: #{rnn_sequence.1} parent=1 // pred_region
      _
    $region13: #{rnn_sequence.1} parent=1 // pred_fallthru
      _
    // Predicated region
    $region14: #{rnn_sequence.1} parent=1 // pred_check
      _
    $region15: #{rnn_sequence.1} parent=1 // pred_check_branch
      %20 = sbr.rel (0) target = $region17
    $region16: #{rnn_sequence.1} parent=1 // pred_region
      %s22 = ssub.s32 2048, 2048
      %23 = vsyncadd [#allocation4], %s22
      %s24 = sshll.u32 [#allocation3], 4
      %s25 = int_to_ptr.vmem [resolvable:$true] %s24
      %30 = dma.hbm_to_vmem [thread:$0]  %s3, 2048, %s25, [#allocation4], 128, 128, 8
    $region17: #{rnn_sequence.1} parent=1 // pred_fallthru
      _
    // Predicated region
    $region18: #{rnn_sequence.1} parent=1 // pred_check
      _
    $region19: #{rnn_sequence.1} parent=1 // pred_check_branch
      %32 = sbr.rel (0) target = $region21
    $region20: #{rnn_sequence.1} parent=1 // pred_region
      _
    $region21: #{rnn_sequence.1} parent=1 // pred_fallthru
      _
    // Predicated region
    $region22: #{rnn_sequence.1} parent=1 // pred_check
      _
    $region23: #{rnn_sequence.1} parent=1 // pred_check_branch
      %34 = sbr.rel (0) target = $region25
    $region24: #{rnn_sequence.1} parent=1 // pred_region
      %35 = dma.done [#allocation4], 2048
    $region25: #{rnn_sequence.1} parent=1 // pred_fallthru
      _
    %p37 = scmp.eq.s32.totalorder 0, 0
    // Predicated region
    $region26: #{rnn_sequence.1} parent=1 // pred_check
      %p38 = pneg %p37
    $region27: #{rnn_sequence.1} parent=1 // pred_check_branch
      %40 = sbr.rel (%p38) target = $region29
    $region28: #{rnn_sequence.1} parent=1 // pred_region
      %v41 = vld [vmem:[%s1] sm:$0xff]
      %42 = vst [vmem:[#allocation2] sm:$0xff] %v41
    $region29: #{rnn_sequence.1} parent=1 // pred_fallthru
      _
    %v43 = vld [vmem:[%s2] sm:$0xff]
    %v44 = vld [vmem:[%s2 + $0x8] sm:$0xff]
    %v45 = vld [vmem:[%s2 + $0x10] sm:$0xff]
    %v46 = vld [vmem:[%s2 + $0x18] sm:$0xff]
    %v47 = vld [vmem:[%s2 + $0x20] sm:$0xff]
    %v48 = vld [vmem:[%s2 + $0x28] sm:$0xff]
    %v49 = vld [vmem:[%s2 + $0x30] sm:$0xff]
    %v50 = vld [vmem:[%s2 + $0x38] sm:$0xff]
    %v51 = vld [vmem:[#allocation3] sm:$0xff]
    %v52 = vld [vmem:[#allocation3 + $0x8] sm:$0xff]
    %v53 = vld [vmem:[#allocation3 + $0x10] sm:$0xff]
    %v54 = vld [vmem:[#allocation3 + $0x18] sm:$0xff]
    %v55 = vld [vmem:[#allocation3 + $0x20] sm:$0xff]
    %v56 = vld [vmem:[#allocation3 + $0x28] sm:$0xff]
    %v57 = vld [vmem:[#allocation3 + $0x30] sm:$0xff]
    %v58 = vld [vmem:[#allocation3 + $0x38] sm:$0xff]
    %v59 = vld [vmem:[#allocation3 + $0x40] sm:$0xff]
    %v60 = vld [vmem:[#allocation3 + $0x48] sm:$0xff]
    %v61 = vld [vmem:[#allocation3 + $0x50] sm:$0xff]
    %v62 = vld [vmem:[#allocation3 + $0x58] sm:$0xff]
    %v63 = vld [vmem:[#allocation3 + $0x60] sm:$0xff]
    %v64 = vld [vmem:[#allocation3 + $0x68] sm:$0xff]
    %v65 = vld [vmem:[#allocation3 + $0x70] sm:$0xff]
    %v66 = vld [vmem:[#allocation3 + $0x78] sm:$0xff]
    %v67 = vld [vmem:[%s4] sm:$0x3]
    %v69 = vlaneseq
    %v70 = vshrl.u32 %v69, 7
    %v71 = vsub.s32 0, %v70
    %v72 = vrot.slane %v67, %v71
    %v73 = vlaneseq
    %v74 = vshrl.u32 %v73, 7
    %v75 = vsub.s32 1, %v74
    %v76 = vrot.slane %v67, %v75
    %v79 = vld [vmem:[#allocation2] sm:$0xff]
    %v80 = vld [vmem:[%s0] sm:$0xf]
    %v81 = vpack.c.bf16 %v79, %v79
    %v98 = vunpack.c.l.b16 %v51
    %v99 = vunpack.c.h.b16 %v51
    %v100 = vunpack.c.l.b16 %v52
    %v101 = vunpack.c.h.b16 %v52
    %v102 = vunpack.c.l.b16 %v53
    %v103 = vunpack.c.h.b16 %v53
    %v104 = vunpack.c.l.b16 %v54
    %v105 = vunpack.c.h.b16 %v54
    %v106 = vunpack.c.l.b16 %v55
    %v107 = vunpack.c.h.b16 %v55
    %v108 = vunpack.c.l.b16 %v56
    %v109 = vunpack.c.h.b16 %v56
    %v110 = vunpack.c.l.b16 %v57
    %v111 = vunpack.c.h.b16 %v57
    %v112 = vunpack.c.l.b16 %v58
    %v113 = vunpack.c.h.b16 %v58
    %v114 = vunpack.c.l.b16 %v59
    %v115 = vunpack.c.h.b16 %v59
    %v116 = vunpack.c.l.b16 %v60
    %v117 = vunpack.c.h.b16 %v60
    %v118 = vunpack.c.l.b16 %v61
    %v119 = vunpack.c.h.b16 %v61
    %v120 = vunpack.c.l.b16 %v62
    %v121 = vunpack.c.h.b16 %v62
    %v122 = vunpack.c.l.b16 %v63
    %v123 = vunpack.c.h.b16 %v63
    %v124 = vunpack.c.l.b16 %v64
    %v125 = vunpack.c.h.b16 %v64
    %v126 = vunpack.c.l.b16 %v65
    %v127 = vunpack.c.h.b16 %v65
    %v128 = vunpack.c.l.b16 %v66
    %v129 = vunpack.c.h.b16 %v66
    %v130 = vpack.c.b16 %v100, %v98
    %v131 = vpack.c.b16 %v101, %v99
    %v132 = vpack.c.b16 %v104, %v102
    %v133 = vpack.c.b16 %v105, %v103
    %v134 = vpack.c.b16 %v108, %v106
    %v135 = vpack.c.b16 %v109, %v107
    %v136 = vpack.c.b16 %v112, %v110
    %v137 = vpack.c.b16 %v113, %v111
    %v138 = vpack.c.b16 %v116, %v114
    %v139 = vpack.c.b16 %v117, %v115
    %v140 = vpack.c.b16 %v120, %v118
    %v141 = vpack.c.b16 %v121, %v119
    %v142 = vpack.c.b16 %v124, %v122
    %v143 = vpack.c.b16 %v125, %v123
    %v144 = vpack.c.b16 %v128, %v126
    %v145 = vpack.c.b16 %v129, %v127
    %162 = vmatprep.subr.bf16.mxu0 %v131
    %163 = vmatpush1.bf16.msra.mxu0 %v130
    %164 = vmatprep.subr.bf16.mxu0 %v133
    %165 = vmatpush1.bf16.msra.mxu0 %v132
    %166 = vmatprep.subr.bf16.mxu0 %v135
    %167 = vmatpush1.bf16.msra.mxu0 %v134
    %168 = vmatprep.subr.bf16.mxu0 %v137
    %169 = vmatpush1.bf16.msra.mxu0 %v136
    %170 = vmatprep.subr.bf16.mxu0 %v139
    %171 = vmatpush1.bf16.msra.mxu0 %v138
    %172 = vmatprep.subr.bf16.mxu0 %v141
    %173 = vmatpush1.bf16.msra.mxu0 %v140
    %174 = vmatprep.subr.bf16.mxu0 %v143
    %175 = vmatpush1.bf16.msra.mxu0 %v142
    %176 = vmatprep.subr.bf16.mxu0 %v145
    %177 = vmatpush1.bf16.msra.mxu0 %v144
    %178 = vmatprep.subr.bf16.mxu0 0
    %179 = vmatpush1.bf16.msra.mxu0 0
    %180 = vmatprep.subr.bf16.mxu0 0
    %181 = vmatpush1.bf16.msra.mxu0 0
    %182 = vmatprep.subr.bf16.mxu0 0
    %183 = vmatpush1.bf16.msra.mxu0 0
    %184 = vmatprep.subr.bf16.mxu0 0
    %185 = vmatpush1.bf16.msra.mxu0 0
    %186 = vmatprep.subr.bf16.mxu0 0
    %187 = vmatpush1.bf16.msra.mxu0 0
    %188 = vmatprep.subr.bf16.mxu0 0
    %189 = vmatpush1.bf16.msra.mxu0 0
    %190 = vmatprep.subr.bf16.mxu0 0
    %191 = vmatpush1.bf16.msra.mxu0 0
    %192 = vmatprep.subr.bf16.mxu0 0
    %193 = vmatpush1.bf16.msra.mxu0 0
    %194 = vmatprep.mubr.bf16.mxu0 0
    %195 = vmatmul.mubr.bf16.gmra.mrb[0].mxu0 %v81
    %v196 = vpop.f32.mrb[0].mxu0
    %v197 = vadd.f32 0.0, %v196
    %v198 = vpop.f32.mrb[0].mxu0
    %v199 = vadd.f32 0.0, %v198
    %v200 = vpop.f32.mrb[0].mxu0
    %v201 = vpop.f32.mrb[0].mxu0
    %202 = vdwg.mxu0
    %v211 = vunpack.c.l.b16 %v43
    %v212 = vunpack.c.h.b16 %v43
    %v213 = vunpack.c.l.b16 %v44
    %v214 = vunpack.c.h.b16 %v44
    %v215 = vunpack.c.l.b16 %v45
    %v216 = vunpack.c.h.b16 %v45
    %v217 = vunpack.c.l.b16 %v46
    %v218 = vunpack.c.h.b16 %v46
    %v219 = vunpack.c.l.b16 %v47
    %v220 = vunpack.c.h.b16 %v47
    %v221 = vunpack.c.l.b16 %v48
    %v222 = vunpack.c.h.b16 %v48
    %v223 = vunpack.c.l.b16 %v49
    %v224 = vunpack.c.h.b16 %v49
    %v225 = vunpack.c.l.b16 %v50
    %v226 = vunpack.c.h.b16 %v50
    %v227 = vpack.c.b16 %v213, %v211
    %v228 = vpack.c.b16 %v214, %v212
    %v229 = vpack.c.b16 %v217, %v215
    %v230 = vpack.c.b16 %v218, %v216
    %v231 = vpack.c.b16 %v221, %v219
    %v232 = vpack.c.b16 %v222, %v220
    %v233 = vpack.c.b16 %v225, %v223
    %v234 = vpack.c.b16 %v226, %v224
    %vm243 = vcmask 523264
    %v245 = vsel %vm243, %v80, 0
    %247 = vmatprep.subr.bf16.mxu0 %v228
    %248 = vmatpush1.bf16.msra.mxu0 %v227
    %249 = vmatprep.subr.bf16.mxu0 %v230
    %250 = vmatpush1.bf16.msra.mxu0 %v229
    %251 = vmatprep.subr.bf16.mxu0 %v232
    %252 = vmatpush1.bf16.msra.mxu0 %v231
    %253 = vmatprep.subr.bf16.mxu0 %v234
    %254 = vmatpush1.bf16.msra.mxu0 %v233
    %255 = vmatprep.subr.bf16.mxu0 0
    %256 = vmatpush1.bf16.msra.mxu0 0
    %257 = vmatprep.subr.bf16.mxu0 0
    %258 = vmatpush1.bf16.msra.mxu0 0
    %259 = vmatprep.subr.bf16.mxu0 0
    %260 = vmatpush1.bf16.msra.mxu0 0
    %261 = vmatprep.subr.bf16.mxu0 0
    %262 = vmatpush1.bf16.msra.mxu0 0
    %263 = vmatprep.subr.bf16.mxu0 0
    %264 = vmatpush1.bf16.msra.mxu0 0
    %265 = vmatprep.subr.bf16.mxu0 0
    %266 = vmatpush1.bf16.msra.mxu0 0
    %267 = vmatprep.subr.bf16.mxu0 0
    %268 = vmatpush1.bf16.msra.mxu0 0
    %269 = vmatprep.subr.bf16.mxu0 0
    %270 = vmatpush1.bf16.msra.mxu0 0
    %271 = vmatprep.subr.bf16.mxu0 0
    %272 = vmatpush1.bf16.msra.mxu0 0
    %273 = vmatprep.subr.bf16.mxu0 0
    %274 = vmatpush1.bf16.msra.mxu0 0
    %275 = vmatprep.subr.bf16.mxu0 0
    %276 = vmatpush1.bf16.msra.mxu0 0
    %277 = vmatprep.subr.bf16.mxu0 0
    %278 = vmatpush1.bf16.msra.mxu0 0
    %279 = vmatprep.mubr.bf16.mxu0 0
    %280 = vmatmul.mubr.bf16.gmra.mrb[0].mxu0 %v245
    %v281 = vpop.f32.mrb[0].mxu0
    %v282 = vadd.f32 %v197, %v281
    %v283 = vpop.f32.mrb[0].mxu0
    %v284 = vadd.f32 %v199, %v283
    %v285 = vpop.f32.mrb[0].mxu0
    %v286 = vpop.f32.mrb[0].mxu0
    %287 = vdwg.mxu0
    %v288 = vadd.f32 %v282, %v72
    %v289 = vadd.f32 %v284, %v76
    %290 = vmax.xlane.f32.xlu0 %v288
    %v291 = vpop.xlane.xlu0 %290
    %v292 = vsub.f32 %v288, %v291
    %v293 = vmul.f32 %v292, 1.442695
    %v294 = vpow.pop %v293
    %295 = vadd.xlane.f32.xlu0 %v294
    %v296 = vpop.xlane.xlu0 %295
    %v297 = vlog2.pop %v296
    %v298 = vmul.f32 %v297, 0.6931472
    %v299 = vsub.f32 %v292, %v298
    %300 = vst [vmem:[%s5] sm:$0xff] %v299
    %s301 = smul.u32 0, 8
    %p302 = scmp.eq.s32.totalorder %s301, 7
    // Predicated region
    $region30: #{rnn_sequence.1} parent=1 // pred_check
      %p303 = pneg %p302
    $region31: #{rnn_sequence.1} parent=1 // pred_check_branch
      %305 = sbr.rel (%p303) target = $region33
    $region32: #{rnn_sequence.1} parent=1 // pred_region
      %306 = vst [vmem:[%s6] sm:$0xff] %v289
    $region33: #{rnn_sequence.1} parent=1 // pred_fallthru
      _
    %s307 = scalar_lea.vmem %s0, 4
    %v308 = vld [vmem:[%s307] sm:$0xf]
    %v309 = vpack.c.bf16 %v289, %v289
    %310 = vmatprep.subr.bf16.mxu0 %v131
    %311 = vmatpush1.bf16.msra.mxu0 %v130
    %312 = vmatprep.subr.bf16.mxu0 %v133
    %313 = vmatpush1.bf16.msra.mxu0 %v132
    %314 = vmatprep.subr.bf16.mxu0 %v135
    %315 = vmatpush1.bf16.msra.mxu0 %v134
    %316 = vmatprep.subr.bf16.mxu0 %v137
    %317 = vmatpush1.bf16.msra.mxu0 %v136
    %318 = vmatprep.subr.bf16.mxu0 %v139
    %319 = vmatpush1.bf16.msra.mxu0 %v138
    %320 = vmatprep.subr.bf16.mxu0 %v141
    %321 = vmatpush1.bf16.msra.mxu0 %v140
    %322 = vmatprep.subr.bf16.mxu0 %v143
    %323 = vmatpush1.bf16.msra.mxu0 %v142
    %324 = vmatprep.subr.bf16.mxu0 %v145
    %325 = vmatpush1.bf16.msra.mxu0 %v144
    %326 = vmatprep.subr.bf16.mxu0 0
    %327 = vmatpush1.bf16.msra.mxu0 0
    %328 = vmatprep.subr.bf16.mxu0 0
    %329 = vmatpush1.bf16.msra.mxu0 0
    %330 = vmatprep.subr.bf16.mxu0 0
    %331 = vmatpush1.bf16.msra.mxu0 0
    %332 = vmatprep.subr.bf16.mxu0 0
    %333 = vmatpush1.bf16.msra.mxu0 0
    %334 = vmatprep.subr.bf16.mxu0 0
    %335 = vmatpush1.bf16.msra.mxu0 0
    %336 = vmatprep.subr.bf16.mxu0 0
    %337 = vmatpush1.bf16.msra.mxu0 0
    %338 = vmatprep.subr.bf16.mxu0 0
    %339 = vmatpush1.bf16.msra.mxu0 0
    %340 = vmatprep.subr.bf16.mxu0 0
    %341 = vmatpush1.bf16.msra.mxu0 0
    %342 = vmatprep.mubr.bf16.mxu0 0
    %343 = vmatmul.mubr.bf16.gmra.mrb[0].mxu0 %v309
    %v344 = vpop.f32.mrb[0].mxu0
    %v345 = vadd.f32 0.0, %v344
    %v346 = vpop.f32.mrb[0].mxu0
    %v347 = vadd.f32 0.0, %v346
    %v348 = vpop.f32.mrb[0].mxu0
    %v349 = vpop.f32.mrb[0].mxu0
    %350 = vdwg.mxu0
    %v352 = vsel %vm243, %v308, 0
    %354 = vmatprep.subr.bf16.mxu0 %v228
    %355 = vmatpush1.bf16.msra.mxu0 %v227
    %356 = vmatprep.subr.bf16.mxu0 %v230
    %357 = vmatpush1.bf16.msra.mxu0 %v229
    %358 = vmatprep.subr.bf16.mxu0 %v232
    %359 = vmatpush1.bf16.msra.mxu0 %v231
    %360 = vmatprep.subr.bf16.mxu0 %v234
    %361 = vmatpush1.bf16.msra.mxu0 %v233
    %362 = vmatprep.subr.bf16.mxu0 0
    %363 = vmatpush1.bf16.msra.mxu0 0
    %364 = vmatprep.subr.bf16.mxu0 0
    %365 = vmatpush1.bf16.msra.mxu0 0
    %366 = vmatprep.subr.bf16.mxu0 0
    %367 = vmatpush1.bf16.msra.mxu0 0
    %368 = vmatprep.subr.bf16.mxu0 0
    %369 = vmatpush1.bf16.msra.mxu0 0
    %370 = vmatprep.subr.bf16.mxu0 0
    %371 = vmatpush1.bf16.msra.mxu0 0
    %372 = vmatprep.subr.bf16.mxu0 0
    %373 = vmatpush1.bf16.msra.mxu0 0
    %374 = vmatprep.subr.bf16.mxu0 0
    %375 = vmatpush1.bf16.msra.mxu0 0
    %376 = vmatprep.subr.bf16.mxu0 0
    %377 = vmatpush1.bf16.msra.mxu0 0
    %378 = vmatprep.subr.bf16.mxu0 0
    %379 = vmatpush1.bf16.msra.mxu0 0
    %380 = vmatprep.subr.bf16.mxu0 0
    %381 = vmatpush1.bf16.msra.mxu0 0
    %382 = vmatprep.subr.bf16.mxu0 0
    %383 = vmatpush1.bf16.msra.mxu0 0
    %384 = vmatprep.subr.bf16.mxu0 0
    %385 = vmatpush1.bf16.msra.mxu0 0
    %386 = vmatprep.mubr.bf16.mxu0 0
    %387 = vmatmul.mubr.bf16.gmra.mrb[0].mxu0 %v352
    %v388 = vpop.f32.mrb[0].mxu0
    %v389 = vadd.f32 %v345, %v388
    %v390 = vpop.f32.mrb[0].mxu0
    %v391 = vadd.f32 %v347, %v390
    %v392 = vpop.f32.mrb[0].mxu0
    %v393 = vpop.f32.mrb[0].mxu0
    %394 = vdwg.mxu0
    %v395 = vadd.f32 %v389, %v72
    %v396 = vadd.f32 %v391, %v76
    %397 = vmax.xlane.f32.xlu0 %v395
    %v398 = vpop.xlane.xlu0 %397
    %v399 = vsub.f32 %v395, %v398
    %v400 = vmul.f32 %v399, 1.442695
    %v401 = vpow.pop %v400
    %402 = vadd.xlane.f32.xlu0 %v401
    %v403 = vpop.xlane.xlu0 %402
    %v404 = vlog2.pop %v403
    %v405 = vmul.f32 %v404, 0.6931472
    %v406 = vsub.f32 %v399, %v405
    %s407 = scalar_lea.vmem %s5, 8
    %408 = vst [vmem:[%s407] sm:$0xff] %v406
    %s409 = sadd.s32 %s301, 1
    %p410 = scmp.eq.s32.totalorder %s409, 7
    // Predicated region
    $region34: #{rnn_sequence.1} parent=1 // pred_check
      %p411 = pneg %p410
    $region35: #{rnn_sequence.1} parent=1 // pred_check_branch
      %413 = sbr.rel (%p411) target = $region37
    $region36: #{rnn_sequence.1} parent=1 // pred_region
      %414 = vst [vmem:[%s6] sm:$0xff] %v396
    $region37: #{rnn_sequence.1} parent=1 // pred_fallthru
      _
    %s415 = scalar_lea.vmem %s0, 8
    %v416 = vld [vmem:[%s415] sm:$0xf]
    %v417 = vpack.c.bf16 %v396, %v396
    %418 = vmatprep.subr.bf16.mxu0 %v131
    %419 = vmatpush1.bf16.msra.mxu0 %v130
    %420 = vmatprep.subr.bf16.mxu0 %v133
    %421 = vmatpush1.bf16.msra.mxu0 %v132
    %422 = vmatprep.subr.bf16.mxu0 %v135
    %423 = vmatpush1.bf16.msra.mxu0 %v134
    %424 = vmatprep.subr.bf16.mxu0 %v137
    %425 = vmatpush1.bf16.msra.mxu0 %v136
    %426 = vmatprep.subr.bf16.mxu0 %v139
    %427 = vmatpush1.bf16.msra.mxu0 %v138
    %428 = vmatprep.subr.bf16.mxu0 %v141
    %429 = vmatpush1.bf16.msra.mxu0 %v140
    %430 = vmatprep.subr.bf16.mxu0 %v143
    %431 = vmatpush1.bf16.msra.mxu0 %v142
    %432 = vmatprep.subr.bf16.mxu0 %v145
    %433 = vmatpush1.bf16.msra.mxu0 %v144
    %434 = vmatprep.subr.bf16.mxu0 0
    %435 = vmatpush1.bf16.msra.mxu0 0
    %436 = vmatprep.subr.bf16.mxu0 0
    %437 = vmatpush1.bf16.msra.mxu0 0
    %438 = vmatprep.subr.bf16.mxu0 0
    %439 = vmatpush1.bf16.msra.mxu0 0
    %440 = vmatprep.subr.bf16.mxu0 0
    %441 = vmatpush1.bf16.msra.mxu0 0
    %442 = vmatprep.subr.bf16.mxu0 0
    %443 = vmatpush1.bf16.msra.mxu0 0
    %444 = vmatprep.subr.bf16.mxu0 0
    %445 = vmatpush1.bf16.msra.mxu0 0
    %446 = vmatprep.subr.bf16.mxu0 0
    %447 = vmatpush1.bf16.msra.mxu0 0
    %448 = vmatprep.subr.bf16.mxu0 0
    %449 = vmatpush1.bf16.msra.mxu0 0
    %450 = vmatprep.mubr.bf16.mxu0 0
    %451 = vmatmul.mubr.bf16.gmra.mrb[0].mxu0 %v417
    %v452 = vpop.f32.mrb[0].mxu0
    %v453 = vadd.f32 0.0, %v452
    %v454 = vpop.f32.mrb[0].mxu0
    %v455 = vadd.f32 0.0, %v454
    %v456 = vpop.f32.mrb[0].mxu0
    %v457 = vpop.f32.mrb[0].mxu0
    %458 = vdwg.mxu0
    %v460 = vsel %vm243, %v416, 0
    %462 = vmatprep.subr.bf16.mxu0 %v228
    %463 = vmatpush1.bf16.msra.mxu0 %v227
    %464 = vmatprep.subr.bf16.mxu0 %v230
    %465 = vmatpush1.bf16.msra.mxu0 %v229
    %466 = vmatprep.subr.bf16.mxu0 %v232
    %467 = vmatpush1.bf16.msra.mxu0 %v231
    %468 = vmatprep.subr.bf16.mxu0 %v234
    %469 = vmatpush1.bf16.msra.mxu0 %v233
    %470 = vmatprep.subr.bf16.mxu0 0
    %471 = vmatpush1.bf16.msra.mxu0 0
    %472 = vmatprep.subr.bf16.mxu0 0
    %473 = vmatpush1.bf16.msra.mxu0 0
    %474 = vmatprep.subr.bf16.mxu0 0
    %475 = vmatpush1.bf16.msra.mxu0 0
    %476 = vmatprep.subr.bf16.mxu0 0
    %477 = vmatpush1.bf16.msra.mxu0 0
    %478 = vmatprep.subr.bf16.mxu0 0
    %479 = vmatpush1.bf16.msra.mxu0 0
    %480 = vmatprep.subr.bf16.mxu0 0
    %481 = vmatpush1.bf16.msra.mxu0 0
    %482 = vmatprep.subr.bf16.mxu0 0
    %483 = vmatpush1.bf16.msra.mxu0 0
    %484 = vmatprep.subr.bf16.mxu0 0
    %485 = vmatpush1.bf16.msra.mxu0 0
    %486 = vmatprep.subr.bf16.mxu0 0
    %487 = vmatpush1.bf16.msra.mxu0 0
    %488 = vmatprep.subr.bf16.mxu0 0
    %489 = vmatpush1.bf16.msra.mxu0 0
    %490 = vmatprep.subr.bf16.mxu0 0
    %491 = vmatpush1.bf16.msra.mxu0 0
    %492 = vmatprep.subr.bf16.mxu0 0
    %493 = vmatpush1.bf16.msra.mxu0 0
    %494 = vmatprep.mubr.bf16.mxu0 0
    %495 = vmatmul.mubr.bf16.gmra.mrb[0].mxu0 %v460
    %v496 = vpop.f32.mrb[0].mxu0
    %v497 = vadd.f32 %v453, %v496
    %v498 = vpop.f32.mrb[0].mxu0
    %v499 = vadd.f32 %v455, %v498
    %v500 = vpop.f32.mrb[0].mxu0
    %v501 = vpop.f32.mrb[0].mxu0
    %502 = vdwg.mxu0
    %v503 = vadd.f32 %v497, %v72
    %v504 = vadd.f32 %v499, %v76
    %505 = vmax.xlane.f32.xlu0 %v503
    %v506 = vpop.xlane.xlu0 %505
    %v507 = vsub.f32 %v503, %v506
    %v508 = vmul.f32 %v507, 1.442695
    %v509 = vpow.pop %v508
    %510 = vadd.xlane.f32.xlu0 %v509
    %v511 = vpop.xlane.xlu0 %510
    %v512 = vlog2.pop %v511
    %v513 = vmul.f32 %v512, 0.6931472
    %v514 = vsub.f32 %v507, %v513
    %s515 = scalar_lea.vmem %s5, 16
    %516 = vst [vmem:[%s515] sm:$0xff] %v514
    %s517 = sadd.s32 %s301, 2
    %p518 = scmp.eq.s32.totalorder %s517, 7
    // Predicated region
    $region38: #{rnn_sequence.1} parent=1 // pred_check
      %p519 = pneg %p518
    $region39: #{rnn_sequence.1} parent=1 // pred_check_branch
      %521 = sbr.rel (%p519) target = $region41
    $region40: #{rnn_sequence.1} parent=1 // pred_region
      %522 = vst [vmem:[%s6] sm:$0xff] %v504
    $region41: #{rnn_sequence.1} parent=1 // pred_fallthru
      _
    %s523 = scalar_lea.vmem %s0, 12
    %v524 = vld [vmem:[%s523] sm:$0xf]
    %v525 = vpack.c.bf16 %v504, %v504
    %526 = vmatprep.subr.bf16.mxu0 %v131
    %527 = vmatpush1.bf16.msra.mxu0 %v130
    %528 = vmatprep.subr.bf16.mxu0 %v133
    %529 = vmatpush1.bf16.msra.mxu0 %v132
    %530 = vmatprep.subr.bf16.mxu0 %v135
    %531 = vmatpush1.bf16.msra.mxu0 %v134
    %532 = vmatprep.subr.bf16.mxu0 %v137
    %533 = vmatpush1.bf16.msra.mxu0 %v136
    %534 = vmatprep.subr.bf16.mxu0 %v139
    %535 = vmatpush1.bf16.msra.mxu0 %v138
    %536 = vmatprep.subr.bf16.mxu0 %v141
    %537 = vmatpush1.bf16.msra.mxu0 %v140
    %538 = vmatprep.subr.bf16.mxu0 %v143
    %539 = vmatpush1.bf16.msra.mxu0 %v142
    %540 = vmatprep.subr.bf16.mxu0 %v145
    %541 = vmatpush1.bf16.msra.mxu0 %v144
    %542 = vmatprep.subr.bf16.mxu0 0
    %543 = vmatpush1.bf16.msra.mxu0 0
    %544 = vmatprep.subr.bf16.mxu0 0
    %545 = vmatpush1.bf16.msra.mxu0 0
    %546 = vmatprep.subr.bf16.mxu0 0
    %547 = vmatpush1.bf16.msra.mxu0 0
    %548 = vmatprep.subr.bf16.mxu0 0
    %549 = vmatpush1.bf16.msra.mxu0 0
    %550 = vmatprep.subr.bf16.mxu0 0
    %551 = vmatpush1.bf16.msra.mxu0 0
    %552 = vmatprep.subr.bf16.mxu0 0
    %553 = vmatpush1.bf16.msra.mxu0 0
    %554 = vmatprep.subr.bf16.mxu0 0
    %555 = vmatpush1.bf16.msra.mxu0 0
    %556 = vmatprep.subr.bf16.mxu0 0
    %557 = vmatpush1.bf16.msra.mxu0 0
    %558 = vmatprep.mubr.bf16.mxu0 0
    %559 = vmatmul.mubr.bf16.gmra.mrb[0].mxu0 %v525
    %v560 = vpop.f32.mrb[0].mxu0
    %v561 = vadd.f32 0.0, %v560
    %v562 = vpop.f32.mrb[0].mxu0
    %v563 = vadd.f32 0.0, %v562
    %v564 = vpop.f32.mrb[0].mxu0
    %v565 = vpop.f32.mrb[0].mxu0
    %566 = vdwg.mxu0
    %v568 = vsel %vm243, %v524, 0
    %570 = vmatprep.subr.bf16.mxu0 %v228
    %571 = vmatpush1.bf16.msra.mxu0 %v227
    %572 = vmatprep.subr.bf16.mxu0 %v230
    %573 = vmatpush1.bf16.msra.mxu0 %v229
    %574 = vmatprep.subr.bf16.mxu0 %v232
    %575 = vmatpush1.bf16.msra.mxu0 %v231
    %576 = vmatprep.subr.bf16.mxu0 %v234
    %577 = vmatpush1.bf16.msra.mxu0 %v233
    %578 = vmatprep.subr.bf16.mxu0 0
    %579 = vmatpush1.bf16.msra.mxu0 0
    %580 = vmatprep.subr.bf16.mxu0 0
    %581 = vmatpush1.bf16.msra.mxu0 0
    %582 = vmatprep.subr.bf16.mxu0 0
    %583 = vmatpush1.bf16.msra.mxu0 0
    %584 = vmatprep.subr.bf16.mxu0 0
    %585 = vmatpush1.bf16.msra.mxu0 0
    %586 = vmatprep.subr.bf16.mxu0 0
    %587 = vmatpush1.bf16.msra.mxu0 0
    %588 = vmatprep.subr.bf16.mxu0 0
    %589 = vmatpush1.bf16.msra.mxu0 0
    %590 = vmatprep.subr.bf16.mxu0 0
    %591 = vmatpush1.bf16.msra.mxu0 0
    %592 = vmatprep.subr.bf16.mxu0 0
    %593 = vmatpush1.bf16.msra.mxu0 0
    %594 = vmatprep.subr.bf16.mxu0 0
    %595 = vmatpush1.bf16.msra.mxu0 0
    %596 = vmatprep.subr.bf16.mxu0 0
    %597 = vmatpush1.bf16.msra.mxu0 0
    %598 = vmatprep.subr.bf16.mxu0 0
    %599 = vmatpush1.bf16.msra.mxu0 0
    %600 = vmatprep.subr.bf16.mxu0 0
    %601 = vmatpush1.bf16.msra.mxu0 0
    %602 = vmatprep.mubr.bf16.mxu0 0
    %603 = vmatmul.mubr.bf16.gmra.mrb[0].mxu0 %v568
    %v604 = vpop.f32.mrb[0].mxu0
    %v605 = vadd.f32 %v561, %v604
    %v606 = vpop.f32.mrb[0].mxu0
    %v607 = vadd.f32 %v563, %v606
    %v608 = vpop.f32.mrb[0].mxu0
    %v609 = vpop.f32.mrb[0].mxu0
    %610 = vdwg.mxu0
    %v611 = vadd.f32 %v605, %v72
    %v612 = vadd.f32 %v607, %v76
    %613 = vmax.xlane.f32.xlu0 %v611
    %v614 = vpop.xlane.xlu0 %613
    %v615 = vsub.f32 %v611, %v614
    %v616 = vmul.f32 %v615, 1.442695
    %v617 = vpow.pop %v616
    %618 = vadd.xlane.f32.xlu0 %v617
    %v619 = vpop.xlane.xlu0 %618
    %v620 = vlog2.pop %v619
    %v621 = vmul.f32 %v620, 0.6931472
    %v622 = vsub.f32 %v615, %v621
    %s623 = scalar_lea.vmem %s5, 24
    %624 = vst [vmem:[%s623] sm:$0xff] %v622
    %s625 = sadd.s32 %s301, 3
    %p626 = scmp.eq.s32.totalorder %s625, 7
    // Predicated region
    $region42: #{rnn_sequence.1} parent=1 // pred_check
      %p627 = pneg %p626
    $region43: #{rnn_sequence.1} parent=1 // pred_check_branch
      %629 = sbr.rel (%p627) target = $region45
    $region44: #{rnn_sequence.1} parent=1 // pred_region
      %630 = vst [vmem:[%s6] sm:$0xff] %v612
    $region45: #{rnn_sequence.1} parent=1 // pred_fallthru
      _
    %s631 = scalar_lea.vmem %s0, 16
    %v632 = vld [vmem:[%s631] sm:$0xf]
    %v633 = vpack.c.bf16 %v612, %v612
    %634 = vmatprep.subr.bf16.mxu0 %v131
    %635 = vmatpush1.bf16.msra.mxu0 %v130
    %636 = vmatprep.subr.bf16.mxu0 %v133
    %637 = vmatpush1.bf16.msra.mxu0 %v132
    %638 = vmatprep.subr.bf16.mxu0 %v135
    %639 = vmatpush1.bf16.msra.mxu0 %v134
    %640 = vmatprep.subr.bf16.mxu0 %v137
    %641 = vmatpush1.bf16.msra.mxu0 %v136
    %642 = vmatprep.subr.bf16.mxu0 %v139
    %643 = vmatpush1.bf16.msra.mxu0 %v138
    %644 = vmatprep.subr.bf16.mxu0 %v141
    %645 = vmatpush1.bf16.msra.mxu0 %v140
    %646 = vmatprep.subr.bf16.mxu0 %v143
    %647 = vmatpush1.bf16.msra.mxu0 %v142
    %648 = vmatprep.subr.bf16.mxu0 %v145
    %649 = vmatpush1.bf16.msra.mxu0 %v144
    %650 = vmatprep.subr.bf16.mxu0 0
    %651 = vmatpush1.bf16.msra.mxu0 0
    %652 = vmatprep.subr.bf16.mxu0 0
    %653 = vmatpush1.bf16.msra.mxu0 0
    %654 = vmatprep.subr.bf16.mxu0 0
    %655 = vmatpush1.bf16.msra.mxu0 0
    %656 = vmatprep.subr.bf16.mxu0 0
    %657 = vmatpush1.bf16.msra.mxu0 0
    %658 = vmatprep.subr.bf16.mxu0 0
    %659 = vmatpush1.bf16.msra.mxu0 0
    %660 = vmatprep.subr.bf16.mxu0 0
    %661 = vmatpush1.bf16.msra.mxu0 0
    %662 = vmatprep.subr.bf16.mxu0 0
    %663 = vmatpush1.bf16.msra.mxu0 0
    %664 = vmatprep.subr.bf16.mxu0 0
    %665 = vmatpush1.bf16.msra.mxu0 0
    %666 = vmatprep.mubr.bf16.mxu0 0
    %667 = vmatmul.mubr.bf16.gmra.mrb[0].mxu0 %v633
    %v668 = vpop.f32.mrb[0].mxu0
    %v669 = vadd.f32 0.0, %v668
    %v670 = vpop.f32.mrb[0].mxu0
    %v671 = vadd.f32 0.0, %v670
    %v672 = vpop.f32.mrb[0].mxu0
    %v673 = vpop.f32.mrb[0].mxu0
    %674 = vdwg.mxu0
    %v676 = vsel %vm243, %v632, 0
    %678 = vmatprep.subr.bf16.mxu0 %v228
    %679 = vmatpush1.bf16.msra.mxu0 %v227
    %680 = vmatprep.subr.bf16.mxu0 %v230
    %681 = vmatpush1.bf16.msra.mxu0 %v229
    %682 = vmatprep.subr.bf16.mxu0 %v232
    %683 = vmatpush1.bf16.msra.mxu0 %v231
    %684 = vmatprep.subr.bf16.mxu0 %v234
    %685 = vmatpush1.bf16.msra.mxu0 %v233
    %686 = vmatprep.subr.bf16.mxu0 0
    %687 = vmatpush1.bf16.msra.mxu0 0
    %688 = vmatprep.subr.bf16.mxu0 0
    %689 = vmatpush1.bf16.msra.mxu0 0
    %690 = vmatprep.subr.bf16.mxu0 0
    %691 = vmatpush1.bf16.msra.mxu0 0
    %692 = vmatprep.subr.bf16.mxu0 0
    %693 = vmatpush1.bf16.msra.mxu0 0
    %694 = vmatprep.subr.bf16.mxu0 0
    %695 = vmatpush1.bf16.msra.mxu0 0
    %696 = vmatprep.subr.bf16.mxu0 0
    %697 = vmatpush1.bf16.msra.mxu0 0
    %698 = vmatprep.subr.bf16.mxu0 0
    %699 = vmatpush1.bf16.msra.mxu0 0
    %700 = vmatprep.subr.bf16.mxu0 0
    %701 = vmatpush1.bf16.msra.mxu0 0
    %702 = vmatprep.subr.bf16.mxu0 0
    %703 = vmatpush1.bf16.msra.mxu0 0
    %704 = vmatprep.subr.bf16.mxu0 0
    %705 = vmatpush1.bf16.msra.mxu0 0
    %706 = vmatprep.subr.bf16.mxu0 0
    %707 = vmatpush1.bf16.msra.mxu0 0
    %708 = vmatprep.subr.bf16.mxu0 0
    %709 = vmatpush1.bf16.msra.mxu0 0
    %710 = vmatprep.mubr.bf16.mxu0 0
    %711 = vmatmul.mubr.bf16.gmra.mrb[0].mxu0 %v676
    %v712 = vpop.f32.mrb[0].mxu0
    %v713 = vadd.f32 %v669, %v712
    %v714 = vpop.f32.mrb[0].mxu0
    %v715 = vadd.f32 %v671, %v714
    %v716 = vpop.f32.mrb[0].mxu0
    %v717 = vpop.f32.mrb[0].mxu0
    %718 = vdwg.mxu0
    %v719 = vadd.f32 %v713, %v72
    %v720 = vadd.f32 %v715, %v76
    %721 = vmax.xlane.f32.xlu0 %v719
    %v722 = vpop.xlane.xlu0 %721
    %v723 = vsub.f32 %v719, %v722
    %v724 = vmul.f32 %v723, 1.442695
    %v725 = vpow.pop %v724
    %726 = vadd.xlane.f32.xlu0 %v725
    %v727 = vpop.xlane.xlu0 %726
    %v728 = vlog2.pop %v727
    %v729 = vmul.f32 %v728, 0.6931472
    %v730 = vsub.f32 %v723, %v729
    %s731 = scalar_lea.vmem %s5, 32
    %732 = vst [vmem:[%s731] sm:$0xff] %v730
    %s733 = sadd.s32 %s301, 4
    %p734 = scmp.eq.s32.totalorder %s733, 7
    // Predicated region
    $region46: #{rnn_sequence.1} parent=1 // pred_check
      %p735 = pneg %p734
    $region47: #{rnn_sequence.1} parent=1 // pred_check_branch
      %737 = sbr.rel (%p735) target = $region49
    $region48: #{rnn_sequence.1} parent=1 // pred_region
      %738 = vst [vmem:[%s6] sm:$0xff] %v720
    $region49: #{rnn_sequence.1} parent=1 // pred_fallthru
      _
    %s739 = scalar_lea.vmem %s0, 20
    %v740 = vld [vmem:[%s739] sm:$0xf]
    %v741 = vpack.c.bf16 %v720, %v720
    %742 = vmatprep.subr.bf16.mxu0 %v131
    %743 = vmatpush1.bf16.msra.mxu0 %v130
    %744 = vmatprep.subr.bf16.mxu0 %v133
    %745 = vmatpush1.bf16.msra.mxu0 %v132
    %746 = vmatprep.subr.bf16.mxu0 %v135
    %747 = vmatpush1.bf16.msra.mxu0 %v134
    %748 = vmatprep.subr.bf16.mxu0 %v137
    %749 = vmatpush1.bf16.msra.mxu0 %v136
    %750 = vmatprep.subr.bf16.mxu0 %v139
    %751 = vmatpush1.bf16.msra.mxu0 %v138
    %752 = vmatprep.subr.bf16.mxu0 %v141
    %753 = vmatpush1.bf16.msra.mxu0 %v140
    %754 = vmatprep.subr.bf16.mxu0 %v143
    %755 = vmatpush1.bf16.msra.mxu0 %v142
    %756 = vmatprep.subr.bf16.mxu0 %v145
    %757 = vmatpush1.bf16.msra.mxu0 %v144
    %758 = vmatprep.subr.bf16.mxu0 0
    %759 = vmatpush1.bf16.msra.mxu0 0
    %760 = vmatprep.subr.bf16.mxu0 0
    %761 = vmatpush1.bf16.msra.mxu0 0
    %762 = vmatprep.subr.bf16.mxu0 0
    %763 = vmatpush1.bf16.msra.mxu0 0
    %764 = vmatprep.subr.bf16.mxu0 0
    %765 = vmatpush1.bf16.msra.mxu0 0
    %766 = vmatprep.subr.bf16.mxu0 0
    %767 = vmatpush1.bf16.msra.mxu0 0
    %768 = vmatprep.subr.bf16.mxu0 0
    %769 = vmatpush1.bf16.msra.mxu0 0
    %770 = vmatprep.subr.bf16.mxu0 0
    %771 = vmatpush1.bf16.msra.mxu0 0
    %772 = vmatprep.subr.bf16.mxu0 0
    %773 = vmatpush1.bf16.msra.mxu0 0
    %774 = vmatprep.mubr.bf16.mxu0 0
    %775 = vmatmul.mubr.bf16.gmra.mrb[0].mxu0 %v741
    %v776 = vpop.f32.mrb[0].mxu0
    %v777 = vadd.f32 0.0, %v776
    %v778 = vpop.f32.mrb[0].mxu0
    %v779 = vadd.f32 0.0, %v778
    %v780 = vpop.f32.mrb[0].mxu0
    %v781 = vpop.f32.mrb[0].mxu0
    %782 = vdwg.mxu0
    %v784 = vsel %vm243, %v740, 0
    %786 = vmatprep.subr.bf16.mxu0 %v228
    %787 = vmatpush1.bf16.msra.mxu0 %v227
    %788 = vmatprep.subr.bf16.mxu0 %v230
    %789 = vmatpush1.bf16.msra.mxu0 %v229
    %790 = vmatprep.subr.bf16.mxu0 %v232
    %791 = vmatpush1.bf16.msra.mxu0 %v231
    %792 = vmatprep.subr.bf16.mxu0 %v234
    %793 = vmatpush1.bf16.msra.mxu0 %v233
    %794 = vmatprep.subr.bf16.mxu0 0
    %795 = vmatpush1.bf16.msra.mxu0 0
    %796 = vmatprep.subr.bf16.mxu0 0
    %797 = vmatpush1.bf16.msra.mxu0 0
    %798 = vmatprep.subr.bf16.mxu0 0
    %799 = vmatpush1.bf16.msra.mxu0 0
    %800 = vmatprep.subr.bf16.mxu0 0
    %801 = vmatpush1.bf16.msra.mxu0 0
    %802 = vmatprep.subr.bf16.mxu0 0
    %803 = vmatpush1.bf16.msra.mxu0 0
    %804 = vmatprep.subr.bf16.mxu0 0
    %805 = vmatpush1.bf16.msra.mxu0 0
    %806 = vmatprep.subr.bf16.mxu0 0
    %807 = vmatpush1.bf16.msra.mxu0 0
    %808 = vmatprep.subr.bf16.mxu0 0
    %809 = vmatpush1.bf16.msra.mxu0 0
    %810 = vmatprep.subr.bf16.mxu0 0
    %811 = vmatpush1.bf16.msra.mxu0 0
    %812 = vmatprep.subr.bf16.mxu0 0
    %813 = vmatpush1.bf16.msra.mxu0 0
    %814 = vmatprep.subr.bf16.mxu0 0
    %815 = vmatpush1.bf16.msra.mxu0 0
    %816 = vmatprep.subr.bf16.mxu0 0
    %817 = vmatpush1.bf16.msra.mxu0 0
    %818 = vmatprep.mubr.bf16.mxu0 0
    %819 = vmatmul.mubr.bf16.gmra.mrb[0].mxu0 %v784
    %v820 = vpop.f32.mrb[0].mxu0
    %v821 = vadd.f32 %v777, %v820
    %v822 = vpop.f32.mrb[0].mxu0
    %v823 = vadd.f32 %v779, %v822
    %v824 = vpop.f32.mrb[0].mxu0
    %v825 = vpop.f32.mrb[0].mxu0
    %826 = vdwg.mxu0
    %v827 = vadd.f32 %v821, %v72
    %v828 = vadd.f32 %v823, %v76
    %829 = vmax.xlane.f32.xlu0 %v827
    %v830 = vpop.xlane.xlu0 %829
    %v831 = vsub.f32 %v827, %v830
    %v832 = vmul.f32 %v831, 1.442695
    %v833 = vpow.pop %v832
    %834 = vadd.xlane.f32.xlu0 %v833
    %v835 = vpop.xlane.xlu0 %834
    %v836 = vlog2.pop %v835
    %v837 = vmul.f32 %v836, 0.6931472
    %v838 = vsub.f32 %v831, %v837
    %s839 = scalar_lea.vmem %s5, 40
    %840 = vst [vmem:[%s839] sm:$0xff] %v838
    %s841 = sadd.s32 %s301, 5
    %p842 = scmp.eq.s32.totalorder %s841, 7
    // Predicated region
    $region50: #{rnn_sequence.1} parent=1 // pred_check
      %p843 = pneg %p842
    $region51: #{rnn_sequence.1} parent=1 // pred_check_branch
      %845 = sbr.rel (%p843) target = $region53
    $region52: #{rnn_sequence.1} parent=1 // pred_region
      %846 = vst [vmem:[%s6] sm:$0xff] %v828
    $region53: #{rnn_sequence.1} parent=1 // pred_fallthru
      _
    %s847 = scalar_lea.vmem %s0, 24
    %v848 = vld [vmem:[%s847] sm:$0xf]
    %v849 = vpack.c.bf16 %v828, %v828
    %850 = vmatprep.subr.bf16.mxu0 %v131
    %851 = vmatpush1.bf16.msra.mxu0 %v130
    %852 = vmatprep.subr.bf16.mxu0 %v133
    %853 = vmatpush1.bf16.msra.mxu0 %v132
    %854 = vmatprep.subr.bf16.mxu0 %v135
    %855 = vmatpush1.bf16.msra.mxu0 %v134
    %856 = vmatprep.subr.bf16.mxu0 %v137
    %857 = vmatpush1.bf16.msra.mxu0 %v136
    %858 = vmatprep.subr.bf16.mxu0 %v139
    %859 = vmatpush1.bf16.msra.mxu0 %v138
    %860 = vmatprep.subr.bf16.mxu0 %v141
    %861 = vmatpush1.bf16.msra.mxu0 %v140
    %862 = vmatprep.subr.bf16.mxu0 %v143
    %863 = vmatpush1.bf16.msra.mxu0 %v142
    %864 = vmatprep.subr.bf16.mxu0 %v145
    %865 = vmatpush1.bf16.msra.mxu0 %v144
    %866 = vmatprep.subr.bf16.mxu0 0
    %867 = vmatpush1.bf16.msra.mxu0 0
    %868 = vmatprep.subr.bf16.mxu0 0
    %869 = vmatpush1.bf16.msra.mxu0 0
    %870 = vmatprep.subr.bf16.mxu0 0
    %871 = vmatpush1.bf16.msra.mxu0 0
    %872 = vmatprep.subr.bf16.mxu0 0
    %873 = vmatpush1.bf16.msra.mxu0 0
    %874 = vmatprep.subr.bf16.mxu0 0
    %875 = vmatpush1.bf16.msra.mxu0 0
    %876 = vmatprep.subr.bf16.mxu0 0
    %877 = vmatpush1.bf16.msra.mxu0 0
    %878 = vmatprep.subr.bf16.mxu0 0
    %879 = vmatpush1.bf16.msra.mxu0 0
    %880 = vmatprep.subr.bf16.mxu0 0
    %881 = vmatpush1.bf16.msra.mxu0 0
    %882 = vmatprep.mubr.bf16.mxu0 0
    %883 = vmatmul.mubr.bf16.gmra.mrb[0].mxu0 %v849
    %v884 = vpop.f32.mrb[0].mxu0
    %v885 = vadd.f32 0.0, %v884
    %v886 = vpop.f32.mrb[0].mxu0
    %v887 = vadd.f32 0.0, %v886
    %v888 = vpop.f32.mrb[0].mxu0
    %v889 = vpop.f32.mrb[0].mxu0
    %890 = vdwg.mxu0
    %v892 = vsel %vm243, %v848, 0
    %894 = vmatprep.subr.bf16.mxu0 %v228
    %895 = vmatpush1.bf16.msra.mxu0 %v227
    %896 = vmatprep.subr.bf16.mxu0 %v230
    %897 = vmatpush1.bf16.msra.mxu0 %v229
    %898 = vmatprep.subr.bf16.mxu0 %v232
    %899 = vmatpush1.bf16.msra.mxu0 %v231
    %900 = vmatprep.subr.bf16.mxu0 %v234
    %901 = vmatpush1.bf16.msra.mxu0 %v233
    %902 = vmatprep.subr.bf16.mxu0 0
    %903 = vmatpush1.bf16.msra.mxu0 0
    %904 = vmatprep.subr.bf16.mxu0 0
    %905 = vmatpush1.bf16.msra.mxu0 0
    %906 = vmatprep.subr.bf16.mxu0 0
    %907 = vmatpush1.bf16.msra.mxu0 0
    %908 = vmatprep.subr.bf16.mxu0 0
    %909 = vmatpush1.bf16.msra.mxu0 0
    %910 = vmatprep.subr.bf16.mxu0 0
    %911 = vmatpush1.bf16.msra.mxu0 0
    %912 = vmatprep.subr.bf16.mxu0 0
    %913 = vmatpush1.bf16.msra.mxu0 0
    %914 = vmatprep.subr.bf16.mxu0 0
    %915 = vmatpush1.bf16.msra.mxu0 0
    %916 = vmatprep.subr.bf16.mxu0 0
    %917 = vmatpush1.bf16.msra.mxu0 0
    %918 = vmatprep.subr.bf16.mxu0 0
    %919 = vmatpush1.bf16.msra.mxu0 0
    %920 = vmatprep.subr.bf16.mxu0 0
    %921 = vmatpush1.bf16.msra.mxu0 0
    %922 = vmatprep.subr.bf16.mxu0 0
    %923 = vmatpush1.bf16.msra.mxu0 0
    %924 = vmatprep.subr.bf16.mxu0 0
    %925 = vmatpush1.bf16.msra.mxu0 0
    %926 = vmatprep.mubr.bf16.mxu0 0
    %927 = vmatmul.mubr.bf16.gmra.mrb[0].mxu0 %v892
    %v928 = vpop.f32.mrb[0].mxu0
    %v929 = vadd.f32 %v885, %v928
    %v930 = vpop.f32.mrb[0].mxu0
    %v931 = vadd.f32 %v887, %v930
    %v932 = vpop.f32.mrb[0].mxu0
    %v933 = vpop.f32.mrb[0].mxu0
    %934 = vdwg.mxu0
    %v935 = vadd.f32 %v929, %v72
    %v936 = vadd.f32 %v931, %v76
    %937 = vmax.xlane.f32.xlu0 %v935
    %v938 = vpop.xlane.xlu0 %937
    %v939 = vsub.f32 %v935, %v938
    %v940 = vmul.f32 %v939, 1.442695
    %v941 = vpow.pop %v940
    %942 = vadd.xlane.f32.xlu0 %v941
    %v943 = vpop.xlane.xlu0 %942
    %v944 = vlog2.pop %v943
    %v945 = vmul.f32 %v944, 0.6931472
    %v946 = vsub.f32 %v939, %v945
    %s947 = scalar_lea.vmem %s5, 48
    %948 = vst [vmem:[%s947] sm:$0xff] %v946
    %s949 = sadd.s32 %s301, 6
    %p950 = scmp.eq.s32.totalorder %s949, 7
    // Predicated region
    $region54: #{rnn_sequence.1} parent=1 // pred_check
      %p951 = pneg %p950
    $region55: #{rnn_sequence.1} parent=1 // pred_check_branch
      %953 = sbr.rel (%p951) target = $region57
    $region56: #{rnn_sequence.1} parent=1 // pred_region
      %954 = vst [vmem:[%s6] sm:$0xff] %v936
    $region57: #{rnn_sequence.1} parent=1 // pred_fallthru
      _
    %s955 = scalar_lea.vmem %s0, 28
    %v956 = vld [vmem:[%s955] sm:$0xf]
    %v957 = vpack.c.bf16 %v936, %v936
    %958 = vmatprep.subr.bf16.mxu0 %v131
    %959 = vmatpush1.bf16.msra.mxu0 %v130
    %960 = vmatprep.subr.bf16.mxu0 %v133
    %961 = vmatpush1.bf16.msra.mxu0 %v132
    %962 = vmatprep.subr.bf16.mxu0 %v135
    %963 = vmatpush1.bf16.msra.mxu0 %v134
    %964 = vmatprep.subr.bf16.mxu0 %v137
    %965 = vmatpush1.bf16.msra.mxu0 %v136
    %966 = vmatprep.subr.bf16.mxu0 %v139
    %967 = vmatpush1.bf16.msra.mxu0 %v138
    %968 = vmatprep.subr.bf16.mxu0 %v141
    %969 = vmatpush1.bf16.msra.mxu0 %v140
    %970 = vmatprep.subr.bf16.mxu0 %v143
    %971 = vmatpush1.bf16.msra.mxu0 %v142
    %972 = vmatprep.subr.bf16.mxu0 %v145
    %973 = vmatpush1.bf16.msra.mxu0 %v144
    %974 = vmatprep.subr.bf16.mxu0 0
    %975 = vmatpush1.bf16.msra.mxu0 0
    %976 = vmatprep.subr.bf16.mxu0 0
    %977 = vmatpush1.bf16.msra.mxu0 0
    %978 = vmatprep.subr.bf16.mxu0 0
    %979 = vmatpush1.bf16.msra.mxu0 0
    %980 = vmatprep.subr.bf16.mxu0 0
    %981 = vmatpush1.bf16.msra.mxu0 0
    %982 = vmatprep.subr.bf16.mxu0 0
    %983 = vmatpush1.bf16.msra.mxu0 0
    %984 = vmatprep.subr.bf16.mxu0 0
    %985 = vmatpush1.bf16.msra.mxu0 0
    %986 = vmatprep.subr.bf16.mxu0 0
    %987 = vmatpush1.bf16.msra.mxu0 0
    %988 = vmatprep.subr.bf16.mxu0 0
    %989 = vmatpush1.bf16.msra.mxu0 0
    %990 = vmatprep.mubr.bf16.mxu0 0
    %991 = vmatmul.mubr.bf16.gmra.mrb[0].mxu0 %v957
    %v992 = vpop.f32.mrb[0].mxu0
    %v993 = vadd.f32 0.0, %v992
    %v994 = vpop.f32.mrb[0].mxu0
    %v995 = vadd.f32 0.0, %v994
    %v996 = vpop.f32.mrb[0].mxu0
    %v997 = vpop.f32.mrb[0].mxu0
    %998 = vdwg.mxu0
    %v1000 = vsel %vm243, %v956, 0
    %1002 = vmatprep.subr.bf16.mxu0 %v228
    %1003 = vmatpush1.bf16.msra.mxu0 %v227
    %1004 = vmatprep.subr.bf16.mxu0 %v230
    %1005 = vmatpush1.bf16.msra.mxu0 %v229
    %1006 = vmatprep.subr.bf16.mxu0 %v232
    %1007 = vmatpush1.bf16.msra.mxu0 %v231
    %1008 = vmatprep.subr.bf16.mxu0 %v234
    %1009 = vmatpush1.bf16.msra.mxu0 %v233
    %1010 = vmatprep.subr.bf16.mxu0 0
    %1011 = vmatpush1.bf16.msra.mxu0 0
    %1012 = vmatprep.subr.bf16.mxu0 0
    %1013 = vmatpush1.bf16.msra.mxu0 0
    %1014 = vmatprep.subr.bf16.mxu0 0
    %1015 = vmatpush1.bf16.msra.mxu0 0
    %1016 = vmatprep.subr.bf16.mxu0 0
    %1017 = vmatpush1.bf16.msra.mxu0 0
    %1018 = vmatprep.subr.bf16.mxu0 0
    %1019 = vmatpush1.bf16.msra.mxu0 0
    %1020 = vmatprep.subr.bf16.mxu0 0
    %1021 = vmatpush1.bf16.msra.mxu0 0
    %1022 = vmatprep.subr.bf16.mxu0 0
    %1023 = vmatpush1.bf16.msra.mxu0 0
    %1024 = vmatprep.subr.bf16.mxu0 0
    %1025 = vmatpush1.bf16.msra.mxu0 0
    %1026 = vmatprep.subr.bf16.mxu0 0
    %1027 = vmatpush1.bf16.msra.mxu0 0
    %1028 = vmatprep.subr.bf16.mxu0 0
    %1029 = vmatpush1.bf16.msra.mxu0 0
    %1030 = vmatprep.subr.bf16.mxu0 0
    %1031 = vmatpush1.bf16.msra.mxu0 0
    %1032 = vmatprep.subr.bf16.mxu0 0
    %1033 = vmatpush1.bf16.msra.mxu0 0
    %1034 = vmatprep.mubr.bf16.mxu0 0
    %1035 = vmatmul.mubr.bf16.gmra.mrb[0].mxu0 %v1000
    %v1036 = vpop.f32.mrb[0].mxu0
    %v1037 = vadd.f32 %v993, %v1036
    %v1038 = vpop.f32.mrb[0].mxu0
    %v1039 = vadd.f32 %v995, %v1038
    %v1040 = vpop.f32.mrb[0].mxu0
    %v1041 = vpop.f32.mrb[0].mxu0
    %1042 = vdwg.mxu0
    %v1043 = vadd.f32 %v1037, %v72
    %v1044 = vadd.f32 %v1039, %v76
    %1045 = vmax.xlane.f32.xlu0 %v1043
    %v1046 = vpop.xlane.xlu0 %1045
    %v1047 = vsub.f32 %v1043, %v1046
    %v1048 = vmul.f32 %v1047, 1.442695
    %v1049 = vpow.pop %v1048
    %1050 = vadd.xlane.f32.xlu0 %v1049
    %v1051 = vpop.xlane.xlu0 %1050
    %v1052 = vlog2.pop %v1051
    %v1053 = vmul.f32 %v1052, 0.6931472
    %v1054 = vsub.f32 %v1047, %v1053
    %s1055 = scalar_lea.vmem %s5, 56
    %1056 = vst [vmem:[%s1055] sm:$0xff] %v1054
    %s1057 = sadd.s32 %s301, 7
    %p1058 = scmp.eq.s32.totalorder %s1057, 7
    // Predicated region
    $region58: #{rnn_sequence.1} parent=1 // pred_check
      %p1059 = pneg %p1058
    $region59: #{rnn_sequence.1} parent=1 // pred_check_branch
      %1061 = sbr.rel (%p1059) target = $region61
    $region60: #{rnn_sequence.1} parent=1 // pred_region
      %1062 = vst [vmem:[%s6] sm:$0xff] %v1044
    $region61: #{rnn_sequence.1} parent=1 // pred_fallthru
      _
    %1063 = vst [vmem:[#allocation2] sm:$0xff] %v1044
    // Predicated region
    $region62: #{rnn_sequence.1} parent=1 // pred_check
      _
    $region63: #{rnn_sequence.1} parent=1 // pred_check_branch
      %1065 = sbr.rel (0) target = $region65
    $region64: #{rnn_sequence.1} parent=1 // pred_region
      _
    $region65: #{rnn_sequence.1} parent=1 // pred_fallthru
      _
    // Predicated region
    $region66: #{rnn_sequence.1} parent=1 // pred_check
      _
    $region67: #{rnn_sequence.1} parent=1 // pred_check_branch
      %1067 = sbr.rel (0) target = $region69
    $region68: #{rnn_sequence.1} parent=1 // pred_region
      _
    $region69: #{rnn_sequence.1} parent=1 // pred_fallthru
      _
    // Predicated region
    $region70: #{rnn_sequence.1} parent=1 // pred_check
      _
    $region71: #{rnn_sequence.1} parent=1 // pred_check_branch
      %1069 = sbr.rel (0) target = $region73
    $region72: #{rnn_sequence.1} parent=1 // pred_region
      _
    $region73: #{rnn_sequence.1} parent=1 // pred_fallthru
      _
    // Predicated region
    $region74: #{rnn_sequence.1} parent=1 // pred_check
      _
    $region75: #{rnn_sequence.1} parent=1 // pred_check_branch
      %1071 = sbr.rel (0) target = $region77
    $region76: #{rnn_sequence.1} parent=1 // pred_region
      _
    $region77: #{rnn_sequence.1} parent=1 // pred_fallthru
      _
    %1072 = vsyncpa [#allocation4], 1

</llo_original>
